<compile_context>
chip_gen: v7x
topology: tpu7x:2x2x1
jax: 0.10.0
libtpu: 0.0.40
codegen_flags: <defaults>
</compile_context>

<pallas_src>
import jax
import jax.numpy as jnp
from jax.experimental import pallas as pl
from jax.experimental.pallas import tpu as pltpu

# ----------------------------- problem sizes ------------------------------
B = 2          # batch
C_IN = 4       # noise channels (x)
H = W = 16     # spatial
C_HINT = 6     # total concatenated hint channels (same for every controlnet)
T_EMB = 32     # timestep-embedding dim
D_CTX = 32     # context (text) embedding dim
C_MODEL = 32   # controlnet hidden / output channels
N_LEVELS = 13  # number of control outputs per controlnet (as in the module)

N_ROWS = B * H * W                       # 512 pixel-rows
D_FEAT = C_IN + C_HINT + T_EMB + D_CTX   # 74 input features per row
D_OUT = N_LEVELS * C_MODEL               # 416 stacked output channels

D_FEAT_PAD = ((D_FEAT + 127) // 128) * 128   # 128, lane-dense K per net
D_OUT_PAD = ((D_OUT + 127) // 128) * 128     # 512, lane-dense output


def _round_up(x, m):
    return ((x + m - 1) // m) * m


# ------------------------------ Pallas kernel ------------------------------
def _multicontrolnet_kernel(feat_ref, w1_ref, wz_ref, out_ref):
    """Single fused controlnet stack:
         h   = relu(feat_fused @ W1_blockdiag)          (bf16 in, f32 acc)
         out = h.bf16 @ Wz_stacked_scaled               (scales pre-folded)
    The sum over controlnets and the per-level scaling are realised by the
    block structure of the fused weights, so no reduction grid axis and no
    resident-accumulator init are needed."""
    h = jnp.maximum(
        jnp.dot(feat_ref[...], w1_ref[...], preferred_element_type=jnp.float32),
        0.0,
    ).astype(jnp.bfloat16)
    out_ref[...] = jnp.dot(h, wz_ref[...], preferred_element_type=jnp.float32)


def multicontrolnet_pallas(feat_fused, w1_fused, wz_fused):
    """feat_fused: (N_ROWS, n_nets*D_FEAT_PAD)  bf16
       w1_fused:   (n_nets*D_FEAT_PAD, H_PAD)   bf16 block-diagonal
       wz_fused:   (H_PAD, D_OUT_PAD)           bf16, scales folded in
       returns     (N_ROWS, D_OUT_PAD) float32"""
    n_rows, k_fused = feat_fused.shape
    _, h_pad = w1_fused.shape
    _, d_out_pad = wz_fused.shape

    # Two parallel row tiles so v7x's two TensorCores each get one; on
    # v5e/v6e the single extra grid step is negligible overhead.
    if n_rows % 2 == 0 and (n_rows // 2) % 16 == 0:
        tile_n = n_rows // 2
    else:
        tile_n = n_rows                      # full-extent block is always legal
    grid = (n_rows // tile_n,)

    return pl.pallas_call(
        _multicontrolnet_kernel,
        out_shape=jax.ShapeDtypeStruct((n_rows, d_out_pad), jnp.float32),
        grid_spec=pltpu.PrefetchScalarGridSpec(
            num_scalar_prefetch=0,
            grid=grid,
            in_specs=[
                pl.BlockSpec((tile_n, k_fused), lambda i: (i, 0)),
                pl.BlockSpec((k_fused, h_pad), lambda i: (0, 0)),
                pl.BlockSpec((h_pad, d_out_pad), lambda i: (0, 0)),
            ],
            out_specs=pl.BlockSpec((tile_n, d_out_pad), lambda i: (i, 0)),
        ),
        compiler_params=pltpu.CompilerParams(
            dimension_semantics=("parallel",),
        ),
    )(feat_fused, w1_fused, wz_fused)


# ------------------------------ glue (plain JAX) ---------------------------
def timestep_embedding(timesteps, dim):
    half = dim // 2
    freqs = jnp.exp(-jnp.log(10000.0) * jnp.arange(half, dtype=jnp.float32) / half)
    args = timesteps.astype(jnp.float32)[:, None] * freqs[None, :]
    return jnp.concatenate([jnp.sin(args), jnp.cos(args)], axis=-1)  # (B, dim)


def nchw_to_rows(t):
    # (B, C, H, W) -> (B*H*W, C)
    return jnp.transpose(t, (0, 2, 3, 1)).reshape(-1, t.shape[1])


def build_net_features(x, hint_list, timesteps, context_list):
    """Mirrors the per-controlnet call:
       model(x, torch.cat(hint, 1), timesteps, torch.cat(context, 1))"""
    x_rows = nchw_to_rows(x)                                        # (N, C_IN)
    hint_cat = jnp.concatenate(hint_list, axis=1)                   # cat dim=1 (channels)
    hint_rows = nchw_to_rows(hint_cat)                              # (N, C_HINT)
    temb = timestep_embedding(timesteps, T_EMB)                     # (B, T_EMB)
    temb_rows = jnp.broadcast_to(temb[:, None, :], (B, H * W, T_EMB)).reshape(-1, T_EMB)
    ctx_cat = jnp.concatenate(context_list, axis=1)                 # cat dim=1 (sequence)
    ctx_pool = jnp.mean(ctx_cat, axis=1)                            # (B, D_CTX)
    ctx_rows = jnp.broadcast_to(ctx_pool[:, None, :], (B, H * W, D_CTX)).reshape(-1, D_CTX)
    return jnp.concatenate([x_rows, hint_rows, temb_rows, ctx_rows], axis=-1)  # (N, D_FEAT)


class MultiControlNetPallas:
    """JAX/Pallas re-implementation of MultiControlNet.forward."""

    def __init__(self, control_nets, cond_keys, image_control_keys, text_control_keys, key):
        self.cond_keys = cond_keys
        self.image_control_keys = image_control_keys
        self.text_control_keys = text_control_keys
        self.control_scales = {name: [1.0] * N_LEVELS for name in cond_keys.keys()}
        # deterministic synthetic parameters for every controlnet
        self.params = {}
        for model_name in control_nets.keys():
            key, k1, k2 = jax.random.split(key, 3)
            w1 = 0.05 * jax.random.normal(k1, (D_FEAT, C_MODEL), jnp.float32)
            wz = 0.05 * jax.random.normal(k2, (C_MODEL, D_OUT), jnp.float32)
            self.params[model_name] = (w1, wz)

    def _gather_active(self, x, hint, timesteps, context):
        feats, w1s, wzs_scaled = [], [], []
        for cond_key, model_name in self.cond_keys.items():
            if cond_key in hint.keys():
                hint__ = hint[self.image_control_keys[cond_key]]
                context__ = (
                    hint[self.text_control_keys[cond_key]]
                    if self.text_control_keys[cond_key] in hint.keys()
                    else [context]
                )
                feats.append(build_net_features(x, hint__, timesteps, context__))
                w1, wz = self.params[model_name]
                sc = jnp.repeat(
                    jnp.asarray(self.control_scales[cond_key], jnp.float32), C_MODEL
                )                                                    # (D_OUT,)
                w1s.append(w1)
                wzs_scaled.append(wz * sc[None, :])                  # fold scale into zero-conv
        return feats, w1s, wzs_scaled

    def forward(self, x, hint, timesteps, context):
        feats, w1s, wzs_scaled = self._gather_active(x, hint, timesteps, context)
        if not feats:
            return None

        n = len(feats)
        n_rows, d_feat = feats[0].shape
        d_feat_pad = _round_up(d_feat, 128)
        d_out = wzs_scaled[0].shape[1]
        d_out_pad = _round_up(d_out, 128)
        h_pad = _round_up(max(n * C_MODEL, 128), 128)

        # fused features: each net's features zero-padded to d_feat_pad, concat on K
        feat_fused = jnp.concatenate(
            [jnp.pad(f, ((0, 0), (0, d_feat_pad - d_feat))) for f in feats], axis=1
        )                                                            # (n_rows, n*d_feat_pad)

        # block-diagonal first-layer weights
        w1_blocks = [
            jnp.pad(w1, ((0, d_feat_pad - d_feat),
                         (k * C_MODEL, h_pad - (k + 1) * C_MODEL)))
            for k, w1 in enumerate(w1s)
        ]
        w1_fused = jnp.concatenate(w1_blocks, axis=0)                # (n*d_feat_pad, h_pad)

        # zero-convs (already scaled) stacked along K of the 2nd matmul,
        # output channels padded to a lane-dense 512
        wz_fused = jnp.concatenate(
            [jnp.pad(wz, ((0, 0), (0, d_out_pad - d_out))) for wz in wzs_scaled], axis=0
        )
        wz_fused = jnp.pad(wz_fused, ((0, h_pad - n * C_MODEL), (0, 0)))  # (h_pad, d_out_pad)

        flat = multicontrolnet_pallas(
            feat_fused.astype(jnp.bfloat16),
            w1_fused.astype(jnp.bfloat16),
            wz_fused.astype(jnp.bfloat16),
        )                                                            # (n_rows, d_out_pad) f32
        flat = flat[:, :d_out]                                       # drop lane padding

        # split the 13 levels with one fused reshape/transpose -> NCHW
        stacked = flat.reshape(B, H, W, N_LEVELS, C_MODEL).transpose(3, 0, 4, 1, 2)
        return [stacked[k] for k in range(N_LEVELS)]

    # reference mirroring the torch-module structure (same bf16 numeric path
    # as the kernel so the check validates the fusion exactly)
    def reference(self, x, hint, timesteps, context):
        feats, w1s, wzs_scaled = self._gather_active(x, hint, timesteps, context)
        if not feats:
            return None
        out = None
        for feat, w1, wz_s in zip(feats, w1s, wzs_scaled):
            h = jnp.maximum(
                jnp.dot(feat.astype(jnp.bfloat16), w1.astype(jnp.bfloat16),
                        preferred_element_type=jnp.float32),
                0.0,
            ).astype(jnp.bfloat16)
            z = jnp.dot(h, wz_s.astype(jnp.bfloat16),
                        preferred_element_type=jnp.float32)
            out = z if out is None else out + z
        control = []
        for k in range(N_LEVELS):
            lvl = out[:, k * C_MODEL:(k + 1) * C_MODEL]
            control.append(lvl.reshape(B, H, W, C_MODEL).transpose(0, 3, 1, 2))
        return control


# ---------------------------------- main -----------------------------------
if __name__ == "__main__":
    key = jax.random.PRNGKey(0)
    key, *ks = jax.random.split(key, 8)

    model = MultiControlNetPallas(
        control_nets={"controlnet_seg": "cfg_seg", "controlnet_depth": "cfg_depth"},
        cond_keys={"seg": "controlnet_seg", "depth": "controlnet_depth"},
        image_control_keys={"seg": "seg_img", "depth": "depth_img"},
        text_control_keys={"seg": "seg_txt", "depth": "depth_txt"},
        key=key,
    )

    x = jax.random.normal(ks[0], (B, C_IN, H, W), jnp.float32)
    timesteps = jnp.array([3.0, 17.0], jnp.float32)
    context = jax.random.normal(ks[1], (B, 8, D_CTX), jnp.float32)

    hint = {
        # "seg" controlnet: two 3-channel image hints + its own text context
        "seg_img": [
            jax.random.normal(ks[2], (B, 3, H, W), jnp.float32),
            jax.random.normal(ks[3], (B, 3, H, W), jnp.float32),
        ],
        "seg_txt": [jax.random.normal(ks[4], (B, 5, D_CTX), jnp.float32)],
        # "depth" controlnet: one 6-channel image hint, no text hint -> uses `context`
        "depth_img": [jax.random.normal(ks[5], (B, 6, H, W), jnp.float32)],
        # both cond keys ("seg", "depth") are present in hint -> both nets run
        "seg": True,
        "depth": True,
    }

    control = model.forward(x, hint, timesteps, context)
    control = [jax.block_until_ready(c) for c in control]

    ref = model.reference(x, hint, timesteps, context)
    for c, r in zip(control, ref):
        assert c.shape == (B, C_MODEL, H, W)
        if not jnp.allclose(c, r, atol=2e-3, rtol=2e-3):
            raise AssertionError("Pallas output mismatch vs JAX reference")

    print("KERNEL_OK")
</pallas_src>

<mosaic_0001>
module attributes {stable_mosaic.version = 11 : i64} {
  func.func @_multicontrolnet_kernel(%arg0: i32, %arg1: memref<256x256xbf16, #tpu.memory_space<vmem>>, %arg2: memref<256x128xbf16, #tpu.memory_space<vmem>>, %arg3: memref<128x512xbf16, #tpu.memory_space<vmem>>, %arg4: memref<256x512xf32, #tpu.memory_space<vmem>>) attributes {dimension_semantics = [#tpu.dimension_semantics<parallel>], iteration_bounds = array<i64: 2>, scalar_prefetch = 0 : i64, scratch_operands = 0 : i64, tpu.core_type = #tpu.core_type<tc>, window_params = [{transform_indices = @transform_0, window_bounds = array<i64: 256, 256>}, {pipeline_mode = #tpu.pipeline_mode<synchronous>, transform_indices = @transform_1, window_bounds = array<i64: 256, 128>}, {pipeline_mode = #tpu.pipeline_mode<synchronous>, transform_indices = @transform_2, window_bounds = array<i64: 128, 512>}, {transform_indices = @transform_3, window_bounds = array<i64: 256, 512>}]} {
    %c0 = arith.constant 0 : index
    %c0_0 = arith.constant 0 : index
    %0 = vector.load %arg1[%c0, %c0_0] : memref<256x256xbf16, #tpu.memory_space<vmem>>, vector<256x256xbf16>
    %c0_1 = arith.constant 0 : index
    %c0_2 = arith.constant 0 : index
    %1 = vector.load %arg2[%c0_1, %c0_2] : memref<256x128xbf16, #tpu.memory_space<vmem>>, vector<256x128xbf16>
    %cst = arith.constant dense<0.000000e+00> : vector<256x128xf32>
    %2 = tpu.matmul %0, %1, %cst {dimension_numbers = #tpu.dot_dimension_numbers<[1], [0], [0], [1], [0, 0, 1, 1], [], []>} : vector<256x256xbf16>, vector<256x128xbf16>, vector<256x128xf32> -> vector<256x128xf32>
    %cst_3 = arith.constant 0.000000e+00 : f32
    %3 = vector.broadcast %cst_3 : f32 to vector<256x128xf32>
    %4 = arith.maximumf %2, %3 : vector<256x128xf32>
    %5 = arith.truncf %4 : vector<256x128xf32> to vector<256x128xbf16>
    %c0_4 = arith.constant 0 : index
    %c0_5 = arith.constant 0 : index
    %6 = vector.load %arg3[%c0_4, %c0_5] : memref<128x512xbf16, #tpu.memory_space<vmem>>, vector<128x512xbf16>
    %cst_6 = arith.constant dense<0.000000e+00> : vector<256x512xf32>
    %7 = tpu.matmul %5, %6, %cst_6 {dimension_numbers = #tpu.dot_dimension_numbers<[1], [0], [0], [1], [0, 0, 1, 1], [], []>} : vector<256x128xbf16>, vector<128x512xbf16>, vector<256x512xf32> -> vector<256x512xf32>
    %c0_7 = arith.constant 0 : index
    %c0_8 = arith.constant 0 : index
    %8 = vector.load %arg4[%c0_7, %c0_8] : memref<256x512xf32, #tpu.memory_space<vmem>>, vector<256x512xf32>
    tpu.vector_store %arg4[%c0_7, %c0_8], %7 {strides = array<i32>} : memref<256x512xf32, #tpu.memory_space<vmem>>, vector<256x512xf32>,
    return
  }
  func.func @transform_0(%arg0: i32) -> (i32, i32) {
    %c0_i32 = arith.constant 0 : i32
    %c0_i32_0 = arith.constant 0 : i32
    return %arg0, %c0_i32 : i32, i32
  }
  func.func @transform_1(%arg0: i32) -> (i32, i32) {
    %c0_i32 = arith.constant 0 : i32
    %c0_i32_0 = arith.constant 0 : i32
    %c0_i32_1 = arith.constant 0 : i32
    return %c0_i32, %c0_i32_0 : i32, i32
  }
  func.func @transform_2(%arg0: i32) -> (i32, i32) {
    %c0_i32 = arith.constant 0 : i32
    %c0_i32_0 = arith.constant 0 : i32
    %c0_i32_1 = arith.constant 0 : i32
    return %c0_i32, %c0_i32_0 : i32, i32
  }
  func.func @transform_3(%arg0: i32) -> (i32, i32) {
    %c0_i32 = arith.constant 0 : i32
    %c0_i32_0 = arith.constant 0 : i32
    return %arg0, %c0_i32 : i32, i32
  }
}

</mosaic_0001>

<llo_original>
// kernel: tpu_custom_call.1
$region0: #{tpu_custom_call.1}
  #allocation0 [shape = 'u32[]', space=smem, size = 0x4, offset = 0x4, fixed_abs, tag = 'smem constant byte address 0x4 - core index']
  #allocation1 [shape = 'u32[144,128]{1,0:T(1,128)}', space=vmem, size = 0x12000, scoped, tag = 'internal scratch']
  %s0 = inlined_call_operand.hbm [shape: bf16[512,256], index: 0, kind: input, shape index: {}]
  %s1 = inlined_call_operand.hbm [shape: bf16[256,128], index: 1, kind: input, shape index: {}]
  %s2 = inlined_call_operand.hbm [shape: bf16[128,512], index: 2, kind: input, shape index: {}]
  %s3 = inlined_call_operand.hbm [shape: f32[512,512], index: 3, kind: output, shape index: {}]
  %s4 = sld [smem:[#allocation0]]
  $region57: #{tpu_custom_call.1} parent=0
    _
  %s6 = ssub.s32 1, %s4
  %s7 = scalar_select 0, %s6, %s4
  $region1: #{tpu_custom_call.1} parent=0
    #allocation2 [shape = 'u8[262144]{0}', space=vmem, size = 0x40000, scoped, tag = 'input window, operand 0']
    #allocation3 [shape = 's32[2]{0}', space=sflag, size = 0x8, scoped, tag = 'scoped memory for tpu_custom_call.1']
    #allocation4 [shape = 's32[2]{0}', space=sflag, size = 0x8, scoped, tag = 'scoped memory for tpu_custom_call.1']
    #allocation5 [shape = 'u8[65536]{0}', space=vmem, size = 0x10000, scoped, tag = 'input window, operand 1, single buffered']
    #allocation6 [shape = 's32[1]{0}', space=sflag, size = 0x4, scoped, tag = 'scoped memory for tpu_custom_call.1']
    #allocation7 [shape = 'u8[131072]{0}', space=vmem, size = 0x20000, scoped, tag = 'input window, operand 2, single buffered']
    #allocation8 [shape = 'u8[1048576]{0}', space=vmem, size = 0x100000, scoped, tag = 'output window, operand 0']
    %8 = vsyncpa [#allocation3], 0
    %s9 = scalar_lea.sflag [#allocation3], 1
    %10 = vsyncpa %s9, 0
    %11 = vsyncpa [#allocation6], 0
    %12 = vsyncpa [#allocation4], 0
    %s13 = scalar_lea.sflag [#allocation4], 1
    %14 = vsyncpa %s13, 0
    loop: start=0, step=1, limit=4
    $region2: #{tpu_custom_call.1} parent=1 // loop_pre_header
      _
    $region3: #{tpu_custom_call.1} parent=1 // loop_header
      %s16 = sphi 0, %s20
      %p17 = scmp.ge.s32.totalorder %s16, 4
      %s26 = sphi 0, %s28
      %s29 = sphi 0, %s26
      %s30 = sphi 0, %s29
      %s46 = sphi 0, %s30
      %s50 = sphi 0, %s50
      %s52 = sphi 0, %s50
      %s53 = sphi 0, %s52
      %s67 = sphi 0, %s53
      %s71 = sphi 0, %s71
      %s73 = sphi 0, %s71
      %s74 = sphi 0, %s73
      %s88 = sphi 0, %s74
      %s94 = sphi 0, %s96
      %s97 = sphi 0, %s94
      %s98 = sphi 0, %s97
      %s114 = sphi 0, %s98
    $region4: #{tpu_custom_call.1} parent=1 // loop_header_branch
      %19 = sbr.rel (%p17) target = $region8
    $region5: #{tpu_custom_call.1} parent=1 // loop_body
      %s21 = ssub.s32 %s16, 1
      %s22 = ssub.s32 %s16, 2
      %s23 = sadd.s32 %s16, 1
      %s24 = ssub.s32 %s16, %s23
      %p25 = scmp.eq.s32.totalorder %s24, 0
      %s27 = sadd.s32 %s26, 1
      %s28 = scalar_select %p25, %s26, %s27
      %p31 = pneg %p25
      %p32 = scmp.eq.s32.totalorder %s16, 1
      %p33 = por %p31, %p32
      %p34 = scmp.ne.s32.totalorder %s26, %s29
      %p35 = scmp.eq.s32.totalorder %s16, 0
      %p36 = por %p34, %p35
      %p37 = scmp.ne.s32.totalorder %s26, %s29
      %p38 = scmp.eq.s32.totalorder %s21, 1
      %p39 = por %p37, %p38
      %p40 = scmp.ne.s32.totalorder %s29, %s30
      %p41 = scmp.eq.s32.totalorder %s21, 0
      %p42 = por %p40, %p41
      %p43 = scmp.ne.s32.totalorder %s29, %s30
      %p44 = scmp.eq.s32.totalorder %s22, 1
      %p45 = por %p43, %p44
      %p47 = scmp.ne.s32.totalorder %s30, %s46
      %p48 = scmp.eq.s32.totalorder %s22, 0
      %p49 = por %p47, %p48
      %s51 = sadd.s32 %s50, 1
      %p54 = scmp.eq.s32.totalorder %s16, 1
      %p55 = scmp.ne.s32.totalorder %s50, %s52
      %p56 = scmp.eq.s32.totalorder %s16, 0
      %p57 = por %p55, %p56
      %p58 = scmp.ne.s32.totalorder %s50, %s52
      %p59 = scmp.eq.s32.totalorder %s21, 1
      %p60 = por %p58, %p59
      %p61 = scmp.ne.s32.totalorder %s52, %s53
      %p62 = scmp.eq.s32.totalorder %s21, 0
      %p63 = por %p61, %p62
      %p64 = scmp.ne.s32.totalorder %s52, %s53
      %p65 = scmp.eq.s32.totalorder %s22, 1
      %p66 = por %p64, %p65
      %p68 = scmp.ne.s32.totalorder %s53, %s67
      %p69 = scmp.eq.s32.totalorder %s22, 0
      %p70 = por %p68, %p69
      %s72 = sadd.s32 %s71, 1
      %p75 = scmp.eq.s32.totalorder %s16, 1
      %p76 = scmp.ne.s32.totalorder %s71, %s73
      %p77 = scmp.eq.s32.totalorder %s16, 0
      %p78 = por %p76, %p77
      %p79 = scmp.ne.s32.totalorder %s71, %s73
      %p80 = scmp.eq.s32.totalorder %s21, 1
      %p81 = por %p79, %p80
      %p82 = scmp.ne.s32.totalorder %s73, %s74
      %p83 = scmp.eq.s32.totalorder %s21, 0
      %p84 = por %p82, %p83
      %p85 = scmp.ne.s32.totalorder %s73, %s74
      %p86 = scmp.eq.s32.totalorder %s22, 1
      %p87 = por %p85, %p86
      %p89 = scmp.ne.s32.totalorder %s74, %s88
      %p90 = scmp.eq.s32.totalorder %s22, 0
      %p91 = por %p89, %p90
      %s92 = ssub.s32 %s16, %s23
      %p93 = scmp.eq.s32.totalorder %s92, 0
      %s95 = sadd.s32 %s94, 1
      %s96 = scalar_select %p93, %s94, %s95
      %p99 = pneg %p93
      %p100 = scmp.eq.s32.totalorder %s16, 1
      %p101 = por %p99, %p100
      %p102 = scmp.ne.s32.totalorder %s94, %s97
      %p103 = scmp.eq.s32.totalorder %s16, 0
      %p104 = por %p102, %p103
      %p105 = scmp.ne.s32.totalorder %s94, %s97
      %p106 = scmp.eq.s32.totalorder %s21, 1
      %p107 = por %p105, %p106
      %p108 = scmp.ne.s32.totalorder %s97, %s98
      %p109 = scmp.eq.s32.totalorder %s21, 0
      %p110 = por %p108, %p109
      %p111 = scmp.ne.s32.totalorder %s97, %s98
      %p112 = scmp.eq.s32.totalorder %s22, 1
      %p113 = por %p111, %p112
      %p115 = scmp.ne.s32.totalorder %s98, %s114
      %p116 = scmp.eq.s32.totalorder %s22, 0
      %p117 = por %p115, %p116
      %p118 = scmp.le.s32.totalorder 1, %s16
      %p119 = scmp.lt.s32.totalorder %s16, 3
      %p120 = pnand %p118, %p119
      %p121 = pneg %p120
      // Predicated region
      $region9: #{tpu_custom_call.1} parent=5 // pred_check
        _
      $region10: #{tpu_custom_call.1} parent=5 // pred_check_branch
        %123 = sbr.rel (%p120) target = $region12
      $region11: #{tpu_custom_call.1} parent=5 // pred_region
        %s124 = ssub.s32 %s16, 1
        // Predicated region
        $region13: #{tpu_custom_call.1} parent=11 // pred_check
          %p125 = pneg %p63
        $region14: #{tpu_custom_call.1} parent=11 // pred_check_branch
          %127 = sbr.rel (%p125) target = $region16
        $region15: #{tpu_custom_call.1} parent=11 // pred_region
          %s129 = ssub.s32 2048, 2048
          %130 = vsyncadd [#allocation6], %s129
          %s131 = sshll.u32 [#allocation5], 4
          %s132 = int_to_ptr.vmem [resolvable:$true] %s131
          %137 = dma.hbm_to_vmem [thread:$0]  %s1, 2048, %s132, [#allocation6], 64, 64, 4
        $region16: #{tpu_custom_call.1} parent=11 // pred_fallthru
          _
        // Predicated region
        $region17: #{tpu_custom_call.1} parent=11 // pred_check
          %p138 = pneg %p84
        $region18: #{tpu_custom_call.1} parent=11 // pred_check_branch
          %140 = sbr.rel (%p138) target = $region20
        $region19: #{tpu_custom_call.1} parent=11 // pred_region
          %s142 = ssub.s32 4096, 4096
          %143 = vsyncadd [#allocation6], %s142
          %s144 = sshll.u32 [#allocation7], 4
          %s145 = int_to_ptr.vmem [resolvable:$true] %s144
          %150 = dma.hbm_to_vmem [thread:$0]  %s2, 4096, %s145, [#allocation6], 256, 256, 16
        $region20: #{tpu_custom_call.1} parent=11 // pred_fallthru
          _
      $region12: #{tpu_custom_call.1} parent=5 // pred_fallthru
        _
      %p151 = scmp.lt.s32.totalorder %s16, 2
      // Predicated region
      $region21: #{tpu_custom_call.1} parent=5 // pred_check
        %p152 = pneg %p151
      $region22: #{tpu_custom_call.1} parent=5 // pred_check_branch
        %154 = sbr.rel (%p152) target = $region24
      $region23: #{tpu_custom_call.1} parent=5 // pred_region
        // Predicated region
        $region25: #{tpu_custom_call.1} parent=23 // pred_check
          %p155 = pneg %p36
        $region26: #{tpu_custom_call.1} parent=23 // pred_check_branch
          %157 = sbr.rel (%p155) target = $region28
        $region27: #{tpu_custom_call.1} parent=23 // pred_region
          %s158 = sand.u32 %s26, 1
          %s159 = scalar_lea.sflag [#allocation3], %s158
          %s160 = sand.u32 %s26, 1
          %s161 = smul.addr %s160, 256
          %s162 = scalar_lea.vmem [#allocation2], %s161
          %s163 = smul.u32 32, %s16
          %s165 = ssub.s32 4096, 4096
          %166 = vsyncadd %s159, %s165
          %s167 = smul.addr %s163, 2
          %s168 = smul.addr %s167, 64
          %s169 = scalar_lea.hbm %s0, %s168
          %s170 = sshll.u32 %s162, 4
          %s171 = int_to_ptr.vmem [resolvable:$true] %s170
          %176 = dma.hbm_to_vmem [thread:$0]  %s169, 4096, %s171, %s159, 128, 128, 8
        $region28: #{tpu_custom_call.1} parent=23 // pred_fallthru
          _
      $region24: #{tpu_custom_call.1} parent=5 // pred_fallthru
        _
      %p177 = scmp.le.s32.totalorder 1, %s16
      %p178 = scmp.lt.s32.totalorder %s16, 3
      %p179 = pnand %p177, %p178
      %p180 = pneg %p179
      // Predicated region
      $region29: #{tpu_custom_call.1} parent=5 // pred_check
        _
      $region30: #{tpu_custom_call.1} parent=5 // pred_check_branch
        %182 = sbr.rel (%p179) target = $region32
      $region31: #{tpu_custom_call.1} parent=5 // pred_region
        %s183 = ssub.s32 %s16, 1
        %s184 = sand.u32 %s29, 1
        %s185 = scalar_lea.sflag [#allocation3], %s184
        %s186 = sand.u32 %s29, 1
        %s187 = smul.addr %s186, 256
        %s188 = scalar_lea.vmem [#allocation2], %s187
        // Predicated region
        $region33: #{tpu_custom_call.1} parent=31 // pred_check
          %p189 = pneg %p42
        $region34: #{tpu_custom_call.1} parent=31 // pred_check_branch
          %191 = sbr.rel (%p189) target = $region36
        $region35: #{tpu_custom_call.1} parent=31 // pred_region
          %192 = dma.done %s185, 4096
        $region36: #{tpu_custom_call.1} parent=31 // pred_fallthru
          _
        // Predicated region
        $region37: #{tpu_custom_call.1} parent=31 // pred_check
          %p193 = pneg %p63
        $region38: #{tpu_custom_call.1} parent=31 // pred_check_branch
          %195 = sbr.rel (%p193) target = $region40
        $region39: #{tpu_custom_call.1} parent=31 // pred_region
          %196 = dma.done [#allocation6], 2048
        $region40: #{tpu_custom_call.1} parent=31 // pred_fallthru
          _
        // Predicated region
        $region41: #{tpu_custom_call.1} parent=31 // pred_check
          %p197 = pneg %p84
        $region42: #{tpu_custom_call.1} parent=31 // pred_check_branch
          %199 = sbr.rel (%p197) target = $region44
        $region43: #{tpu_custom_call.1} parent=31 // pred_region
          %200 = dma.done [#allocation6], 4096
        $region44: #{tpu_custom_call.1} parent=31 // pred_fallthru
          _
        %s201 = sand.u32 %s29, 1
        %s202 = scalar_lea.sflag [#allocation3], %s201
        %s203 = sand.u32 %s29, 1
        %s204 = smul.addr %s203, 256
        %s205 = scalar_lea.vmem [#allocation2], %s204
        %p206 = pneg %p42
        %p207 = pneg %p39
        %p208 = pneg %p63
        %p209 = pneg %p60
        %p210 = pneg %p84
        %p211 = pneg %p81
        %p212 = pneg %p110
        %p213 = pneg %p107
        %s214 = sand.u32 %s97, 1
        %s215 = scalar_lea.sflag [#allocation4], %s214
        %s216 = sand.u32 %s97, 1
        %s217 = smul.addr %s216, 1024
        %s218 = scalar_lea.vmem [#allocation8], %s217
        %s219 = smul.u32 32, %s21
        %s220 = smul.u32 32, %s21
        %v222 = vld [vmem:[%s188] sm:$0xff]
        %v223 = vld [vmem:[%s188 + $0x8] sm:$0xff]
        %v224 = vld [vmem:[%s188 + $0x10] sm:$0xff]
        %v225 = vld [vmem:[%s188 + $0x18] sm:$0xff]
        %v226 = vld [vmem:[%s188 + $0x20] sm:$0xff]
        %v227 = vld [vmem:[%s188 + $0x28] sm:$0xff]
        %v228 = vld [vmem:[%s188 + $0x30] sm:$0xff]
        %v229 = vld [vmem:[%s188 + $0x38] sm:$0xff]
        %v230 = vld [vmem:[%s188 + $0x40] sm:$0xff]
        %v231 = vld [vmem:[%s188 + $0x48] sm:$0xff]
        %v232 = vld [vmem:[%s188 + $0x50] sm:$0xff]
        %v233 = vld [vmem:[%s188 + $0x58] sm:$0xff]
        %v234 = vld [vmem:[%s188 + $0x60] sm:$0xff]
        %v235 = vld [vmem:[%s188 + $0x68] sm:$0xff]
        %v236 = vld [vmem:[%s188 + $0x70] sm:$0xff]
        %v237 = vld [vmem:[%s188 + $0x78] sm:$0xff]
        %v238 = vld [vmem:[%s188 + $0x80] sm:$0xff]
        %v239 = vld [vmem:[%s188 + $0x88] sm:$0xff]
        %v240 = vld [vmem:[%s188 + $0x90] sm:$0xff]
        %v241 = vld [vmem:[%s188 + $0x98] sm:$0xff]
        %v242 = vld [vmem:[%s188 + $0xa0] sm:$0xff]
        %v243 = vld [vmem:[%s188 + $0xa8] sm:$0xff]
        %v244 = vld [vmem:[%s188 + $0xb0] sm:$0xff]
        %v245 = vld [vmem:[%s188 + $0xb8] sm:$0xff]
        %v246 = vld [vmem:[%s188 + $0xc0] sm:$0xff]
        %v247 = vld [vmem:[%s188 + $0xc8] sm:$0xff]
        %v248 = vld [vmem:[%s188 + $0xd0] sm:$0xff]
        %v249 = vld [vmem:[%s188 + $0xd8] sm:$0xff]
        %v250 = vld [vmem:[%s188 + $0xe0] sm:$0xff]
        %v251 = vld [vmem:[%s188 + $0xe8] sm:$0xff]
        %v252 = vld [vmem:[%s188 + $0xf0] sm:$0xff]
        %v253 = vld [vmem:[%s188 + $0xf8] sm:$0xff]
        %v254 = vld [vmem:[#allocation5] sm:$0xf]
        %v255 = vld [vmem:[#allocation5 + $0x4] sm:$0xf]
        %v256 = vld [vmem:[#allocation5 + $0x8] sm:$0xf]
        %v257 = vld [vmem:[#allocation5 + $0xc] sm:$0xf]
        %v258 = vld [vmem:[#allocation5 + $0x10] sm:$0xf]
        %v259 = vld [vmem:[#allocation5 + $0x14] sm:$0xf]
        %v260 = vld [vmem:[#allocation5 + $0x18] sm:$0xf]
        %v261 = vld [vmem:[#allocation5 + $0x1c] sm:$0xf]
        %v262 = vld [vmem:[#allocation5 + $0x20] sm:$0xf]
        %v263 = vld [vmem:[#allocation5 + $0x24] sm:$0xf]
        %v264 = vld [vmem:[#allocation5 + $0x28] sm:$0xf]
        %v265 = vld [vmem:[#allocation5 + $0x2c] sm:$0xf]
        %v266 = vld [vmem:[#allocation5 + $0x30] sm:$0xf]
        %v267 = vld [vmem:[#allocation5 + $0x34] sm:$0xf]
        %v268 = vld [vmem:[#allocation5 + $0x38] sm:$0xf]
        %v269 = vld [vmem:[#allocation5 + $0x3c] sm:$0xf]
        %v270 = vld [vmem:[#allocation5 + $0x40] sm:$0xf]
        %v271 = vld [vmem:[#allocation5 + $0x44] sm:$0xf]
        %v272 = vld [vmem:[#allocation5 + $0x48] sm:$0xf]
        %v273 = vld [vmem:[#allocation5 + $0x4c] sm:$0xf]
        %v274 = vld [vmem:[#allocation5 + $0x50] sm:$0xf]
        %v275 = vld [vmem:[#allocation5 + $0x54] sm:$0xf]
        %v276 = vld [vmem:[#allocation5 + $0x58] sm:$0xf]
        %v277 = vld [vmem:[#allocation5 + $0x5c] sm:$0xf]
        %v278 = vld [vmem:[#allocation5 + $0x60] sm:$0xf]
        %v279 = vld [vmem:[#allocation5 + $0x64] sm:$0xf]
        %v280 = vld [vmem:[#allocation5 + $0x68] sm:$0xf]
        %v281 = vld [vmem:[#allocation5 + $0x6c] sm:$0xf]
        %v282 = vld [vmem:[#allocation5 + $0x70] sm:$0xf]
        %v283 = vld [vmem:[#allocation5 + $0x74] sm:$0xf]
        %v284 = vld [vmem:[#allocation5 + $0x78] sm:$0xf]
        %v285 = vld [vmem:[#allocation5 + $0x7c] sm:$0xf]
        %v318 = vunpack.c.l.b16 %v222
        %v319 = vunpack.c.h.b16 %v222
        %v320 = vunpack.c.l.b16 %v223
        %v321 = vunpack.c.h.b16 %v223
        %v322 = vunpack.c.l.b16 %v224
        %v323 = vunpack.c.h.b16 %v224
        %v324 = vunpack.c.l.b16 %v225
        %v325 = vunpack.c.h.b16 %v225
        %v326 = vunpack.c.l.b16 %v226
        %v327 = vunpack.c.h.b16 %v226
        %v328 = vunpack.c.l.b16 %v227
        %v329 = vunpack.c.h.b16 %v227
        %v330 = vunpack.c.l.b16 %v228
        %v331 = vunpack.c.h.b16 %v228
        %v332 = vunpack.c.l.b16 %v229
        %v333 = vunpack.c.h.b16 %v229
        %v334 = vunpack.c.l.b16 %v230
        %v335 = vunpack.c.h.b16 %v230
        %v336 = vunpack.c.l.b16 %v231
        %v337 = vunpack.c.h.b16 %v231
        %v338 = vunpack.c.l.b16 %v232
        %v339 = vunpack.c.h.b16 %v232
        %v340 = vunpack.c.l.b16 %v233
        %v341 = vunpack.c.h.b16 %v233
        %v342 = vunpack.c.l.b16 %v234
        %v343 = vunpack.c.h.b16 %v234
        %v344 = vunpack.c.l.b16 %v235
        %v345 = vunpack.c.h.b16 %v235
        %v346 = vunpack.c.l.b16 %v236
        %v347 = vunpack.c.h.b16 %v236
        %v348 = vunpack.c.l.b16 %v237
        %v349 = vunpack.c.h.b16 %v237
        %v350 = vunpack.c.l.b16 %v238
        %v351 = vunpack.c.h.b16 %v238
        %v352 = vunpack.c.l.b16 %v239
        %v353 = vunpack.c.h.b16 %v239
        %v354 = vunpack.c.l.b16 %v240
        %v355 = vunpack.c.h.b16 %v240
        %v356 = vunpack.c.l.b16 %v241
        %v357 = vunpack.c.h.b16 %v241
        %v358 = vunpack.c.l.b16 %v242
        %v359 = vunpack.c.h.b16 %v242
        %v360 = vunpack.c.l.b16 %v243
        %v361 = vunpack.c.h.b16 %v243
        %v362 = vunpack.c.l.b16 %v244
        %v363 = vunpack.c.h.b16 %v244
        %v364 = vunpack.c.l.b16 %v245
        %v365 = vunpack.c.h.b16 %v245
        %v366 = vunpack.c.l.b16 %v246
        %v367 = vunpack.c.h.b16 %v246
        %v368 = vunpack.c.l.b16 %v247
        %v369 = vunpack.c.h.b16 %v247
        %v370 = vunpack.c.l.b16 %v248
        %v371 = vunpack.c.h.b16 %v248
        %v372 = vunpack.c.l.b16 %v249
        %v373 = vunpack.c.h.b16 %v249
        %v374 = vunpack.c.l.b16 %v250
        %v375 = vunpack.c.h.b16 %v250
        %v376 = vunpack.c.l.b16 %v251
        %v377 = vunpack.c.h.b16 %v251
        %v378 = vunpack.c.l.b16 %v252
        %v379 = vunpack.c.h.b16 %v252
        %v380 = vunpack.c.l.b16 %v253
        %v381 = vunpack.c.h.b16 %v253
        %v382 = vpack.c.b16 %v320, %v318
        %v383 = vpack.c.b16 %v321, %v319
        %v384 = vpack.c.b16 %v324, %v322
        %v385 = vpack.c.b16 %v325, %v323
        %v386 = vpack.c.b16 %v328, %v326
        %v387 = vpack.c.b16 %v329, %v327
        %v388 = vpack.c.b16 %v332, %v330
        %v389 = vpack.c.b16 %v333, %v331
        %v390 = vpack.c.b16 %v336, %v334
        %v391 = vpack.c.b16 %v337, %v335
        %v392 = vpack.c.b16 %v340, %v338
        %v393 = vpack.c.b16 %v341, %v339
        %v394 = vpack.c.b16 %v344, %v342
        %v395 = vpack.c.b16 %v345, %v343
        %v396 = vpack.c.b16 %v348, %v346
        %v397 = vpack.c.b16 %v349, %v347
        %v398 = vpack.c.b16 %v352, %v350
        %v399 = vpack.c.b16 %v353, %v351
        %v400 = vpack.c.b16 %v356, %v354
        %v401 = vpack.c.b16 %v357, %v355
        %v402 = vpack.c.b16 %v360, %v358
        %v403 = vpack.c.b16 %v361, %v359
        %v404 = vpack.c.b16 %v364, %v362
        %v405 = vpack.c.b16 %v365, %v363
        %v406 = vpack.c.b16 %v368, %v366
        %v407 = vpack.c.b16 %v369, %v367
        %v408 = vpack.c.b16 %v372, %v370
        %v409 = vpack.c.b16 %v373, %v371
        %v410 = vpack.c.b16 %v376, %v374
        %v411 = vpack.c.b16 %v377, %v375
        %v412 = vpack.c.b16 %v380, %v378
        %v413 = vpack.c.b16 %v381, %v379
        %v478 = vunpack.c.l.b16 %v254
        %v479 = vunpack.c.l.b16 %v255
        %v480 = vunpack.c.l.b16 %v256
        %v481 = vunpack.c.l.b16 %v257
        %v482 = vunpack.c.l.b16 %v258
        %v483 = vunpack.c.l.b16 %v259
        %v484 = vunpack.c.l.b16 %v260
        %v485 = vunpack.c.l.b16 %v261
        %v486 = vunpack.c.l.b16 %v262
        %v487 = vunpack.c.l.b16 %v263
        %v488 = vunpack.c.l.b16 %v264
        %v489 = vunpack.c.l.b16 %v265
        %v490 = vunpack.c.l.b16 %v266
        %v491 = vunpack.c.l.b16 %v267
        %v492 = vunpack.c.l.b16 %v268
        %v493 = vunpack.c.l.b16 %v269
        %v494 = vunpack.c.l.b16 %v270
        %v495 = vunpack.c.l.b16 %v271
        %v496 = vunpack.c.l.b16 %v272
        %v497 = vunpack.c.l.b16 %v273
        %v498 = vunpack.c.l.b16 %v274
        %v499 = vunpack.c.l.b16 %v275
        %v500 = vunpack.c.l.b16 %v276
        %v501 = vunpack.c.l.b16 %v277
        %v502 = vunpack.c.l.b16 %v278
        %v503 = vunpack.c.l.b16 %v279
        %v504 = vunpack.c.l.b16 %v280
        %v505 = vunpack.c.l.b16 %v281
        %v506 = vunpack.c.l.b16 %v282
        %v507 = vunpack.c.l.b16 %v283
        %v508 = vunpack.c.l.b16 %v284
        %v509 = vunpack.c.l.b16 %v285
        %v510 = vpack.c.b16 %v479, %v478
        %v511 = vpack.c.b16 %v481, %v480
        %v512 = vpack.c.b16 %v483, %v482
        %v513 = vpack.c.b16 %v485, %v484
        %v514 = vpack.c.b16 %v487, %v486
        %v515 = vpack.c.b16 %v489, %v488
        %v516 = vpack.c.b16 %v491, %v490
        %v517 = vpack.c.b16 %v493, %v492
        %v518 = vpack.c.b16 %v495, %v494
        %v519 = vpack.c.b16 %v497, %v496
        %v520 = vpack.c.b16 %v499, %v498
        %v521 = vpack.c.b16 %v501, %v500
        %v522 = vpack.c.b16 %v503, %v502
        %v523 = vpack.c.b16 %v505, %v504
        %v524 = vpack.c.b16 %v507, %v506
        %v525 = vpack.c.b16 %v509, %v508
        %542 = vmatprep.subr.bf16.mxu0 0
        %543 = vmatpush1.bf16.msra.mxu0 %v510
        %544 = vmatprep.subr.bf16.mxu0 0
        %545 = vmatpush1.bf16.msra.mxu0 %v511
        %546 = vmatprep.subr.bf16.mxu0 0
        %547 = vmatpush1.bf16.msra.mxu0 %v512
        %548 = vmatprep.subr.bf16.mxu0 0
        %549 = vmatpush1.bf16.msra.mxu0 %v513
        %550 = vmatprep.subr.bf16.mxu0 0
        %551 = vmatpush1.bf16.msra.mxu0 %v514
        %552 = vmatprep.subr.bf16.mxu0 0
        %553 = vmatpush1.bf16.msra.mxu0 %v515
        %554 = vmatprep.subr.bf16.mxu0 0
        %555 = vmatpush1.bf16.msra.mxu0 %v516
        %556 = vmatprep.subr.bf16.mxu0 0
        %557 = vmatpush1.bf16.msra.mxu0 %v517
        %558 = vmatprep.subr.bf16.mxu0 0
        %559 = vmatpush1.bf16.msra.mxu0 %v518
        %560 = vmatprep.subr.bf16.mxu0 0
        %561 = vmatpush1.bf16.msra.mxu0 %v519
        %562 = vmatprep.subr.bf16.mxu0 0
        %563 = vmatpush1.bf16.msra.mxu0 %v520
        %564 = vmatprep.subr.bf16.mxu0 0
        %565 = vmatpush1.bf16.msra.mxu0 %v521
        %566 = vmatprep.subr.bf16.mxu0 0
        %567 = vmatpush1.bf16.msra.mxu0 %v522
        %568 = vmatprep.subr.bf16.mxu0 0
        %569 = vmatpush1.bf16.msra.mxu0 %v523
        %570 = vmatprep.subr.bf16.mxu0 0
        %571 = vmatpush1.bf16.msra.mxu0 %v524
        %572 = vmatprep.subr.bf16.mxu0 0
        %573 = vmatpush1.bf16.msra.mxu0 %v525
        %574 = vmatprep.mubr.bf16.mxu0 %v383
        %575 = vmatmul.mubr.bf16.gmra.mrb[0].mxu0 %v382
        %v576 = vpop.f32.mrb[0].mxu0
        %v577 = vadd.f32 0.0, %v576
        %v578 = vpop.f32.mrb[0].mxu0
        %v579 = vpop.f32.mrb[0].mxu0
        %v580 = vadd.f32 0.0, %v579
        %v581 = vpop.f32.mrb[0].mxu0
        %582 = vmatprep.mubr.bf16.mxu0 %v385
        %583 = vmatmul.mubr.bf16.gmra.mrb[0].mxu0 %v384
        %v584 = vpop.f32.mrb[0].mxu0
        %v585 = vadd.f32 0.0, %v584
        %v586 = vpop.f32.mrb[0].mxu0
        %v587 = vpop.f32.mrb[0].mxu0
        %v588 = vadd.f32 0.0, %v587
        %v589 = vpop.f32.mrb[0].mxu0
        %590 = vmatprep.mubr.bf16.mxu0 %v387
        %591 = vmatmul.mubr.bf16.gmra.mrb[0].mxu0 %v386
        %v592 = vpop.f32.mrb[0].mxu0
        %v593 = vadd.f32 0.0, %v592
        %v594 = vpop.f32.mrb[0].mxu0
        %v595 = vpop.f32.mrb[0].mxu0
        %v596 = vadd.f32 0.0, %v595
        %v597 = vpop.f32.mrb[0].mxu0
        %598 = vmatprep.mubr.bf16.mxu0 %v389
        %599 = vmatmul.mubr.bf16.gmra.mrb[0].mxu0 %v388
        %v600 = vpop.f32.mrb[0].mxu0
        %v601 = vadd.f32 0.0, %v600
        %v602 = vpop.f32.mrb[0].mxu0
        %v603 = vpop.f32.mrb[0].mxu0
        %v604 = vadd.f32 0.0, %v603
        %v605 = vpop.f32.mrb[0].mxu0
        %606 = vmatprep.mubr.bf16.mxu0 %v391
        %607 = vmatmul.mubr.bf16.gmra.mrb[0].mxu0 %v390
        %v608 = vpop.f32.mrb[0].mxu0
        %v609 = vadd.f32 0.0, %v608
        %v610 = vpop.f32.mrb[0].mxu0
        %v611 = vpop.f32.mrb[0].mxu0
        %v612 = vadd.f32 0.0, %v611
        %v613 = vpop.f32.mrb[0].mxu0
        %614 = vmatprep.mubr.bf16.mxu0 %v393
        %615 = vmatmul.mubr.bf16.gmra.mrb[0].mxu0 %v392
        %v616 = vpop.f32.mrb[0].mxu0
        %v617 = vadd.f32 0.0, %v616
        %v618 = vpop.f32.mrb[0].mxu0
        %v619 = vpop.f32.mrb[0].mxu0
        %v620 = vadd.f32 0.0, %v619
        %v621 = vpop.f32.mrb[0].mxu0
        %622 = vmatprep.mubr.bf16.mxu0 %v395
        %623 = vmatmul.mubr.bf16.gmra.mrb[0].mxu0 %v394
        %v624 = vpop.f32.mrb[0].mxu0
        %v625 = vadd.f32 0.0, %v624
        %v626 = vpop.f32.mrb[0].mxu0
        %v627 = vpop.f32.mrb[0].mxu0
        %v628 = vadd.f32 0.0, %v627
        %v629 = vpop.f32.mrb[0].mxu0
        %630 = vmatprep.mubr.bf16.mxu0 %v397
        %631 = vmatmul.mubr.bf16.gmra.mrb[0].mxu0 %v396
        %v632 = vpop.f32.mrb[0].mxu0
        %v633 = vadd.f32 0.0, %v632
        %v634 = vpop.f32.mrb[0].mxu0
        %v635 = vpop.f32.mrb[0].mxu0
        %v636 = vadd.f32 0.0, %v635
        %v637 = vpop.f32.mrb[0].mxu0
        %638 = vmatprep.mubr.bf16.mxu0 %v399
        %639 = vmatmul.mubr.bf16.gmra.mrb[0].mxu0 %v398
        %v640 = vpop.f32.mrb[0].mxu0
        %v641 = vadd.f32 0.0, %v640
        %v642 = vpop.f32.mrb[0].mxu0
        %v643 = vpop.f32.mrb[0].mxu0
        %v644 = vadd.f32 0.0, %v643
        %v645 = vpop.f32.mrb[0].mxu0
        %646 = vmatprep.mubr.bf16.mxu0 %v401
        %647 = vmatmul.mubr.bf16.gmra.mrb[0].mxu0 %v400
        %v648 = vpop.f32.mrb[0].mxu0
        %v649 = vadd.f32 0.0, %v648
        %v650 = vpop.f32.mrb[0].mxu0
        %v651 = vpop.f32.mrb[0].mxu0
        %v652 = vadd.f32 0.0, %v651
        %v653 = vpop.f32.mrb[0].mxu0
        %654 = vmatprep.mubr.bf16.mxu0 %v403
        %655 = vmatmul.mubr.bf16.gmra.mrb[0].mxu0 %v402
        %v656 = vpop.f32.mrb[0].mxu0
        %v657 = vadd.f32 0.0, %v656
        %v658 = vpop.f32.mrb[0].mxu0
        %v659 = vpop.f32.mrb[0].mxu0
        %v660 = vadd.f32 0.0, %v659
        %v661 = vpop.f32.mrb[0].mxu0
        %662 = vmatprep.mubr.bf16.mxu0 %v405
        %663 = vmatmul.mubr.bf16.gmra.mrb[0].mxu0 %v404
        %v664 = vpop.f32.mrb[0].mxu0
        %v665 = vadd.f32 0.0, %v664
        %v666 = vpop.f32.mrb[0].mxu0
        %v667 = vpop.f32.mrb[0].mxu0
        %v668 = vadd.f32 0.0, %v667
        %v669 = vpop.f32.mrb[0].mxu0
        %670 = vmatprep.mubr.bf16.mxu0 %v407
        %671 = vmatmul.mubr.bf16.gmra.mrb[0].mxu0 %v406
        %v672 = vpop.f32.mrb[0].mxu0
        %v673 = vadd.f32 0.0, %v672
        %v674 = vpop.f32.mrb[0].mxu0
        %v675 = vpop.f32.mrb[0].mxu0
        %v676 = vadd.f32 0.0, %v675
        %v677 = vpop.f32.mrb[0].mxu0
        %678 = vmatprep.mubr.bf16.mxu0 %v409
        %679 = vmatmul.mubr.bf16.gmra.mrb[0].mxu0 %v408
        %v680 = vpop.f32.mrb[0].mxu0
        %v681 = vadd.f32 0.0, %v680
        %v682 = vpop.f32.mrb[0].mxu0
        %v683 = vpop.f32.mrb[0].mxu0
        %v684 = vadd.f32 0.0, %v683
        %v685 = vpop.f32.mrb[0].mxu0
        %686 = vmatprep.mubr.bf16.mxu0 %v411
        %687 = vmatmul.mubr.bf16.gmra.mrb[0].mxu0 %v410
        %v688 = vpop.f32.mrb[0].mxu0
        %v689 = vadd.f32 0.0, %v688
        %v690 = vpop.f32.mrb[0].mxu0
        %v691 = vpop.f32.mrb[0].mxu0
        %v692 = vadd.f32 0.0, %v691
        %v693 = vpop.f32.mrb[0].mxu0
        %694 = vmatprep.mubr.bf16.mxu0 %v413
        %695 = vmatmul.mubr.bf16.gmra.mrb[0].mxu0 %v412
        %v696 = vpop.f32.mrb[0].mxu0
        %v697 = vadd.f32 0.0, %v696
        %v698 = vpop.f32.mrb[0].mxu0
        %v699 = vpop.f32.mrb[0].mxu0
        %v700 = vadd.f32 0.0, %v699
        %v701 = vpop.f32.mrb[0].mxu0
        %702 = vdwg.mxu0
        %v703 = vmax.f32 %v577, 0.0
        %v704 = vmax.f32 %v580, 0.0
        %v705 = vmax.f32 %v585, 0.0
        %v706 = vmax.f32 %v588, 0.0
        %v707 = vmax.f32 %v593, 0.0
        %v708 = vmax.f32 %v596, 0.0
        %v709 = vmax.f32 %v601, 0.0
        %v710 = vmax.f32 %v604, 0.0
        %v711 = vmax.f32 %v609, 0.0
        %v712 = vmax.f32 %v612, 0.0
        %v713 = vmax.f32 %v617, 0.0
        %v714 = vmax.f32 %v620, 0.0
        %v715 = vmax.f32 %v625, 0.0
        %v716 = vmax.f32 %v628, 0.0
        %v717 = vmax.f32 %v633, 0.0
        %v718 = vmax.f32 %v636, 0.0
        %v719 = vmax.f32 %v641, 0.0
        %v720 = vmax.f32 %v644, 0.0
        %v721 = vmax.f32 %v649, 0.0
        %v722 = vmax.f32 %v652, 0.0
        %v723 = vmax.f32 %v657, 0.0
        %v724 = vmax.f32 %v660, 0.0
        %v725 = vmax.f32 %v665, 0.0
        %v726 = vmax.f32 %v668, 0.0
        %v727 = vmax.f32 %v673, 0.0
        %v728 = vmax.f32 %v676, 0.0
        %v729 = vmax.f32 %v681, 0.0
        %v730 = vmax.f32 %v684, 0.0
        %v731 = vmax.f32 %v689, 0.0
        %v732 = vmax.f32 %v692, 0.0
        %v733 = vmax.f32 %v697, 0.0
        %v734 = vmax.f32 %v700, 0.0
        %v735 = vpack.c.bf16 %v704, %v703
        %v736 = vpack.c.bf16 %v706, %v705
        %v737 = vpack.c.bf16 %v708, %v707
        %v738 = vpack.c.bf16 %v710, %v709
        %v739 = vpack.c.bf16 %v712, %v711
        %v740 = vpack.c.bf16 %v714, %v713
        %v741 = vpack.c.bf16 %v716, %v715
        %v742 = vpack.c.bf16 %v718, %v717
        %v743 = vpack.c.bf16 %v720, %v719
        %v744 = vpack.c.bf16 %v722, %v721
        %v745 = vpack.c.bf16 %v724, %v723
        %v746 = vpack.c.bf16 %v726, %v725
        %v747 = vpack.c.bf16 %v728, %v727
        %v748 = vpack.c.bf16 %v730, %v729
        %v749 = vpack.c.bf16 %v732, %v731
        %v750 = vpack.c.bf16 %v734, %v733
        %v751 = vld [vmem:[#allocation7] sm:$0xff]
        %v752 = vld [vmem:[#allocation7 + $0x8] sm:$0xff]
        %v753 = vld [vmem:[#allocation7 + $0x10] sm:$0xff]
        %v754 = vld [vmem:[#allocation7 + $0x18] sm:$0xff]
        %v755 = vld [vmem:[#allocation7 + $0x20] sm:$0xff]
        %v756 = vld [vmem:[#allocation7 + $0x28] sm:$0xff]
        %v757 = vld [vmem:[#allocation7 + $0x30] sm:$0xff]
        %v758 = vld [vmem:[#allocation7 + $0x38] sm:$0xff]
        %v759 = vld [vmem:[#allocation7 + $0x40] sm:$0xff]
        %v760 = vld [vmem:[#allocation7 + $0x48] sm:$0xff]
        %v761 = vld [vmem:[#allocation7 + $0x50] sm:$0xff]
        %v762 = vld [vmem:[#allocation7 + $0x58] sm:$0xff]
        %v763 = vld [vmem:[#allocation7 + $0x60] sm:$0xff]
        %v764 = vld [vmem:[#allocation7 + $0x68] sm:$0xff]
        %v765 = vld [vmem:[#allocation7 + $0x70] sm:$0xff]
        %v766 = vld [vmem:[#allocation7 + $0x78] sm:$0xff]
        %v767 = vld [vmem:[#allocation7 + $0x80] sm:$0xff]
        %v768 = vld [vmem:[#allocation7 + $0x88] sm:$0xff]
        %v769 = vld [vmem:[#allocation7 + $0x90] sm:$0xff]
        %v770 = vld [vmem:[#allocation7 + $0x98] sm:$0xff]
        %v771 = vld [vmem:[#allocation7 + $0xa0] sm:$0xff]
        %v772 = vld [vmem:[#allocation7 + $0xa8] sm:$0xff]
        %v773 = vld [vmem:[#allocation7 + $0xb0] sm:$0xff]
        %v774 = vld [vmem:[#allocation7 + $0xb8] sm:$0xff]
        %v775 = vld [vmem:[#allocation7 + $0xc0] sm:$0xff]
        %v776 = vld [vmem:[#allocation7 + $0xc8] sm:$0xff]
        %v777 = vld [vmem:[#allocation7 + $0xd0] sm:$0xff]
        %v778 = vld [vmem:[#allocation7 + $0xd8] sm:$0xff]
        %v779 = vld [vmem:[#allocation7 + $0xe0] sm:$0xff]
        %v780 = vld [vmem:[#allocation7 + $0xe8] sm:$0xff]
        %v781 = vld [vmem:[#allocation7 + $0xf0] sm:$0xff]
        %v782 = vld [vmem:[#allocation7 + $0xf8] sm:$0xff]
        %v815 = vunpack.c.l.b16 %v751
        %v816 = vunpack.c.h.b16 %v751
        %v817 = vunpack.c.l.b16 %v752
        %v818 = vunpack.c.h.b16 %v752
        %v819 = vunpack.c.l.b16 %v753
        %v820 = vunpack.c.h.b16 %v753
        %v821 = vunpack.c.l.b16 %v754
        %v822 = vunpack.c.h.b16 %v754
        %v823 = vunpack.c.l.b16 %v755
        %v824 = vunpack.c.h.b16 %v755
        %v825 = vunpack.c.l.b16 %v756
        %v826 = vunpack.c.h.b16 %v756
        %v827 = vunpack.c.l.b16 %v757
        %v828 = vunpack.c.h.b16 %v757
        %v829 = vunpack.c.l.b16 %v758
        %v830 = vunpack.c.h.b16 %v758
        %v831 = vunpack.c.l.b16 %v759
        %v832 = vunpack.c.h.b16 %v759
        %v833 = vunpack.c.l.b16 %v760
        %v834 = vunpack.c.h.b16 %v760
        %v835 = vunpack.c.l.b16 %v761
        %v836 = vunpack.c.h.b16 %v761
        %v837 = vunpack.c.l.b16 %v762
        %v838 = vunpack.c.h.b16 %v762
        %v839 = vunpack.c.l.b16 %v763
        %v840 = vunpack.c.h.b16 %v763
        %v841 = vunpack.c.l.b16 %v764
        %v842 = vunpack.c.h.b16 %v764
        %v843 = vunpack.c.l.b16 %v765
        %v844 = vunpack.c.h.b16 %v765
        %v845 = vunpack.c.l.b16 %v766
        %v846 = vunpack.c.h.b16 %v766
        %v847 = vunpack.c.l.b16 %v767
        %v848 = vunpack.c.h.b16 %v767
        %v849 = vunpack.c.l.b16 %v768
        %v850 = vunpack.c.h.b16 %v768
        %v851 = vunpack.c.l.b16 %v769
        %v852 = vunpack.c.h.b16 %v769
        %v853 = vunpack.c.l.b16 %v770
        %v854 = vunpack.c.h.b16 %v770
        %v855 = vunpack.c.l.b16 %v771
        %v856 = vunpack.c.h.b16 %v771
        %v857 = vunpack.c.l.b16 %v772
        %v858 = vunpack.c.h.b16 %v772
        %v859 = vunpack.c.l.b16 %v773
        %v860 = vunpack.c.h.b16 %v773
        %v861 = vunpack.c.l.b16 %v774
        %v862 = vunpack.c.h.b16 %v774
        %v863 = vunpack.c.l.b16 %v775
        %v864 = vunpack.c.h.b16 %v775
        %v865 = vunpack.c.l.b16 %v776
        %v866 = vunpack.c.h.b16 %v776
        %v867 = vunpack.c.l.b16 %v777
        %v868 = vunpack.c.h.b16 %v777
        %v869 = vunpack.c.l.b16 %v778
        %v870 = vunpack.c.h.b16 %v778
        %v871 = vunpack.c.l.b16 %v779
        %v872 = vunpack.c.h.b16 %v779
        %v873 = vunpack.c.l.b16 %v780
        %v874 = vunpack.c.h.b16 %v780
        %v875 = vunpack.c.l.b16 %v781
        %v876 = vunpack.c.h.b16 %v781
        %v877 = vunpack.c.l.b16 %v782
        %v878 = vunpack.c.h.b16 %v782
        %v879 = vpack.c.b16 %v819, %v815
        %v880 = vpack.c.b16 %v820, %v816
        %v881 = vpack.c.b16 %v821, %v817
        %v882 = vpack.c.b16 %v822, %v818
        %v883 = vpack.c.b16 %v827, %v823
        %v884 = vpack.c.b16 %v828, %v824
        %v885 = vpack.c.b16 %v829, %v825
        %v886 = vpack.c.b16 %v830, %v826
        %v887 = vpack.c.b16 %v835, %v831
        %v888 = vpack.c.b16 %v836, %v832
        %v889 = vpack.c.b16 %v837, %v833
        %v890 = vpack.c.b16 %v838, %v834
        %v891 = vpack.c.b16 %v843, %v839
        %v892 = vpack.c.b16 %v844, %v840
        %v893 = vpack.c.b16 %v845, %v841
        %v894 = vpack.c.b16 %v846, %v842
        %v895 = vpack.c.b16 %v851, %v847
        %v896 = vpack.c.b16 %v852, %v848
        %v897 = vpack.c.b16 %v853, %v849
        %v898 = vpack.c.b16 %v854, %v850
        %v899 = vpack.c.b16 %v859, %v855
        %v900 = vpack.c.b16 %v860, %v856
        %v901 = vpack.c.b16 %v861, %v857
        %v902 = vpack.c.b16 %v862, %v858
        %v903 = vpack.c.b16 %v867, %v863
        %v904 = vpack.c.b16 %v868, %v864
        %v905 = vpack.c.b16 %v869, %v865
        %v906 = vpack.c.b16 %v870, %v866
        %v907 = vpack.c.b16 %v875, %v871
        %v908 = vpack.c.b16 %v876, %v872
        %v909 = vpack.c.b16 %v877, %v873
        %v910 = vpack.c.b16 %v878, %v874
        %943 = vmatprep.subr.bf16.mxu0 %v880
        %944 = vmatpush1.bf16.msra.mxu0 %v879
        %945 = vmatprep.subr.bf16.mxu0 %v884
        %946 = vmatpush1.bf16.msra.mxu0 %v883
        %947 = vmatprep.subr.bf16.mxu0 %v888
        %948 = vmatpush1.bf16.msra.mxu0 %v887
        %949 = vmatprep.subr.bf16.mxu0 %v892
        %950 = vmatpush1.bf16.msra.mxu0 %v891
        %951 = vmatprep.subr.bf16.mxu0 %v896
        %952 = vmatpush1.bf16.msra.mxu0 %v895
        %953 = vmatprep.subr.bf16.mxu0 %v900
        %954 = vmatpush1.bf16.msra.mxu0 %v899
        %955 = vmatprep.subr.bf16.mxu0 %v904
        %956 = vmatpush1.bf16.msra.mxu0 %v903
        %957 = vmatprep.subr.bf16.mxu0 %v908
        %958 = vmatpush1.bf16.msra.mxu0 %v907
        %959 = vmatprep.subr.bf16.mxu0 0
        %960 = vmatpush1.bf16.msra.mxu0 0
        %961 = vmatprep.subr.bf16.mxu0 0
        %962 = vmatpush1.bf16.msra.mxu0 0
        %963 = vmatprep.subr.bf16.mxu0 0
        %964 = vmatpush1.bf16.msra.mxu0 0
        %965 = vmatprep.subr.bf16.mxu0 0
        %966 = vmatpush1.bf16.msra.mxu0 0
        %967 = vmatprep.subr.bf16.mxu0 0
        %968 = vmatpush1.bf16.msra.mxu0 0
        %969 = vmatprep.subr.bf16.mxu0 0
        %970 = vmatpush1.bf16.msra.mxu0 0
        %971 = vmatprep.subr.bf16.mxu0 0
        %972 = vmatpush1.bf16.msra.mxu0 0
        %973 = vmatprep.subr.bf16.mxu0 0
        %974 = vmatpush1.bf16.msra.mxu0 0
        %975 = vmatprep.mubr.bf16.mxu0 0
        %976 = vmatmul.mubr.bf16.gmra.mrb[0].mxu0 %v735
        %v977 = vpop.f32.mrb[0].mxu0
        %v978 = vadd.f32 0.0, %v977
        %v979 = vpop.f32.mrb[0].mxu0
        %v980 = vadd.f32 0.0, %v979
        %v981 = vpop.f32.mrb[0].mxu0
        %v982 = vadd.f32 0.0, %v981
        %v983 = vpop.f32.mrb[0].mxu0
        %v984 = vadd.f32 0.0, %v983
        %985 = vmatprep.mubr.bf16.mxu0 0
        %986 = vmatmul.mubr.bf16.gmra.mrb[0].mxu0 %v736
        %v987 = vpop.f32.mrb[0].mxu0
        %v988 = vadd.f32 0.0, %v987
        %v989 = vpop.f32.mrb[0].mxu0
        %v990 = vadd.f32 0.0, %v989
        %v991 = vpop.f32.mrb[0].mxu0
        %v992 = vadd.f32 0.0, %v991
        %v993 = vpop.f32.mrb[0].mxu0
        %v994 = vadd.f32 0.0, %v993
        %995 = vmatprep.mubr.bf16.mxu0 0
        %996 = vmatmul.mubr.bf16.gmra.mrb[0].mxu0 %v737
        %v997 = vpop.f32.mrb[0].mxu0
        %v998 = vadd.f32 0.0, %v997
        %v999 = vpop.f32.mrb[0].mxu0
        %v1000 = vadd.f32 0.0, %v999
        %v1001 = vpop.f32.mrb[0].mxu0
        %v1002 = vadd.f32 0.0, %v1001
        %v1003 = vpop.f32.mrb[0].mxu0
        %v1004 = vadd.f32 0.0, %v1003
        %1005 = vmatprep.mubr.bf16.mxu0 0
        %1006 = vmatmul.mubr.bf16.gmra.mrb[0].mxu0 %v738
        %v1007 = vpop.f32.mrb[0].mxu0
        %v1008 = vadd.f32 0.0, %v1007
        %v1009 = vpop.f32.mrb[0].mxu0
        %v1010 = vadd.f32 0.0, %v1009
        %v1011 = vpop.f32.mrb[0].mxu0
        %v1012 = vadd.f32 0.0, %v1011
        %v1013 = vpop.f32.mrb[0].mxu0
        %v1014 = vadd.f32 0.0, %v1013
        %1015 = vmatprep.mubr.bf16.mxu0 0
        %1016 = vmatmul.mubr.bf16.gmra.mrb[0].mxu0 %v739
        %v1017 = vpop.f32.mrb[0].mxu0
        %v1018 = vadd.f32 0.0, %v1017
        %v1019 = vpop.f32.mrb[0].mxu0
        %v1020 = vadd.f32 0.0, %v1019
        %v1021 = vpop.f32.mrb[0].mxu0
        %v1022 = vadd.f32 0.0, %v1021
        %v1023 = vpop.f32.mrb[0].mxu0
        %v1024 = vadd.f32 0.0, %v1023
        %1025 = vmatprep.mubr.bf16.mxu0 0
        %1026 = vmatmul.mubr.bf16.gmra.mrb[0].mxu0 %v740
        %v1027 = vpop.f32.mrb[0].mxu0
        %v1028 = vadd.f32 0.0, %v1027
        %v1029 = vpop.f32.mrb[0].mxu0
        %v1030 = vadd.f32 0.0, %v1029
        %v1031 = vpop.f32.mrb[0].mxu0
        %v1032 = vadd.f32 0.0, %v1031
        %v1033 = vpop.f32.mrb[0].mxu0
        %v1034 = vadd.f32 0.0, %v1033
        %1035 = vmatprep.mubr.bf16.mxu0 0
        %1036 = vmatmul.mubr.bf16.gmra.mrb[0].mxu0 %v741
        %v1037 = vpop.f32.mrb[0].mxu0
        %v1038 = vadd.f32 0.0, %v1037
        %v1039 = vpop.f32.mrb[0].mxu0
        %v1040 = vadd.f32 0.0, %v1039
        %v1041 = vpop.f32.mrb[0].mxu0
        %v1042 = vadd.f32 0.0, %v1041
        %v1043 = vpop.f32.mrb[0].mxu0
        %v1044 = vadd.f32 0.0, %v1043
        %1045 = vmatprep.mubr.bf16.mxu0 0
        %1046 = vmatmul.mubr.bf16.gmra.mrb[0].mxu0 %v742
        %v1047 = vpop.f32.mrb[0].mxu0
        %v1048 = vadd.f32 0.0, %v1047
        %v1049 = vpop.f32.mrb[0].mxu0
        %v1050 = vadd.f32 0.0, %v1049
        %v1051 = vpop.f32.mrb[0].mxu0
        %v1052 = vadd.f32 0.0, %v1051
        %v1053 = vpop.f32.mrb[0].mxu0
        %v1054 = vadd.f32 0.0, %v1053
        %1055 = vmatprep.mubr.bf16.mxu0 0
        %1056 = vmatmul.mubr.bf16.gmra.mrb[0].mxu0 %v743
        %v1057 = vpop.f32.mrb[0].mxu0
        %v1058 = vadd.f32 0.0, %v1057
        %v1059 = vpop.f32.mrb[0].mxu0
        %v1060 = vadd.f32 0.0, %v1059
        %v1061 = vpop.f32.mrb[0].mxu0
        %v1062 = vadd.f32 0.0, %v1061
        %v1063 = vpop.f32.mrb[0].mxu0
        %v1064 = vadd.f32 0.0, %v1063
        %1065 = vmatprep.mubr.bf16.mxu0 0
        %1066 = vmatmul.mubr.bf16.gmra.mrb[0].mxu0 %v744
        %v1067 = vpop.f32.mrb[0].mxu0
        %v1068 = vadd.f32 0.0, %v1067
        %v1069 = vpop.f32.mrb[0].mxu0
        %v1070 = vadd.f32 0.0, %v1069
        %v1071 = vpop.f32.mrb[0].mxu0
        %v1072 = vadd.f32 0.0, %v1071
        %v1073 = vpop.f32.mrb[0].mxu0
        %v1074 = vadd.f32 0.0, %v1073
        %1075 = vmatprep.mubr.bf16.mxu0 0
        %1076 = vmatmul.mubr.bf16.gmra.mrb[0].mxu0 %v745
        %v1077 = vpop.f32.mrb[0].mxu0
        %v1078 = vadd.f32 0.0, %v1077
        %v1079 = vpop.f32.mrb[0].mxu0
        %v1080 = vadd.f32 0.0, %v1079
        %v1081 = vpop.f32.mrb[0].mxu0
        %v1082 = vadd.f32 0.0, %v1081
        %v1083 = vpop.f32.mrb[0].mxu0
        %v1084 = vadd.f32 0.0, %v1083
        %1085 = vmatprep.mubr.bf16.mxu0 0
        %1086 = vmatmul.mubr.bf16.gmra.mrb[0].mxu0 %v746
        %v1087 = vpop.f32.mrb[0].mxu0
        %v1088 = vadd.f32 0.0, %v1087
        %v1089 = vpop.f32.mrb[0].mxu0
        %v1090 = vadd.f32 0.0, %v1089
        %v1091 = vpop.f32.mrb[0].mxu0
        %v1092 = vadd.f32 0.0, %v1091
        %v1093 = vpop.f32.mrb[0].mxu0
        %v1094 = vadd.f32 0.0, %v1093
        %1095 = vmatprep.mubr.bf16.mxu0 0
        %1096 = vmatmul.mubr.bf16.gmra.mrb[0].mxu0 %v747
        %v1097 = vpop.f32.mrb[0].mxu0
        %v1098 = vadd.f32 0.0, %v1097
        %v1099 = vpop.f32.mrb[0].mxu0
        %v1100 = vadd.f32 0.0, %v1099
        %v1101 = vpop.f32.mrb[0].mxu0
        %v1102 = vadd.f32 0.0, %v1101
        %v1103 = vpop.f32.mrb[0].mxu0
        %v1104 = vadd.f32 0.0, %v1103
        %1105 = vmatprep.mubr.bf16.mxu0 0
        %1106 = vmatmul.mubr.bf16.gmra.mrb[0].mxu0 %v748
        %v1107 = vpop.f32.mrb[0].mxu0
        %v1108 = vadd.f32 0.0, %v1107
        %v1109 = vpop.f32.mrb[0].mxu0
        %v1110 = vadd.f32 0.0, %v1109
        %v1111 = vpop.f32.mrb[0].mxu0
        %v1112 = vadd.f32 0.0, %v1111
        %v1113 = vpop.f32.mrb[0].mxu0
        %v1114 = vadd.f32 0.0, %v1113
        %1115 = vmatprep.mubr.bf16.mxu0 0
        %1116 = vmatmul.mubr.bf16.gmra.mrb[0].mxu0 %v749
        %v1117 = vpop.f32.mrb[0].mxu0
        %v1118 = vadd.f32 0.0, %v1117
        %v1119 = vpop.f32.mrb[0].mxu0
        %v1120 = vadd.f32 0.0, %v1119
        %v1121 = vpop.f32.mrb[0].mxu0
        %v1122 = vadd.f32 0.0, %v1121
        %v1123 = vpop.f32.mrb[0].mxu0
        %v1124 = vadd.f32 0.0, %v1123
        %1125 = vmatprep.mubr.bf16.mxu0 0
        %1126 = vmatmul.mubr.bf16.gmra.mrb[0].mxu0 %v750
        %v1127 = vpop.f32.mrb[0].mxu0
        %v1128 = vadd.f32 0.0, %v1127
        %v1129 = vpop.f32.mrb[0].mxu0
        %v1130 = vadd.f32 0.0, %v1129
        %v1131 = vpop.f32.mrb[0].mxu0
        %v1132 = vadd.f32 0.0, %v1131
        %v1133 = vpop.f32.mrb[0].mxu0
        %v1134 = vadd.f32 0.0, %v1133
        %1135 = vdwg.mxu0
        %1136 = vmatprep.subr.bf16.mxu0 %v882
        %1137 = vmatpush1.bf16.msra.mxu0 %v881
        %1138 = vmatprep.subr.bf16.mxu0 %v886
        %1139 = vmatpush1.bf16.msra.mxu0 %v885
        %1140 = vmatprep.subr.bf16.mxu0 %v890
        %1141 = vmatpush1.bf16.msra.mxu0 %v889
        %1142 = vmatprep.subr.bf16.mxu0 %v894
        %1143 = vmatpush1.bf16.msra.mxu0 %v893
        %1144 = vmatprep.subr.bf16.mxu0 %v898
        %1145 = vmatpush1.bf16.msra.mxu0 %v897
        %1146 = vmatprep.subr.bf16.mxu0 %v902
        %1147 = vmatpush1.bf16.msra.mxu0 %v901
        %1148 = vmatprep.subr.bf16.mxu0 %v906
        %1149 = vmatpush1.bf16.msra.mxu0 %v905
        %1150 = vmatprep.subr.bf16.mxu0 %v910
        %1151 = vmatpush1.bf16.msra.mxu0 %v909
        %1152 = vmatprep.subr.bf16.mxu0 0
        %1153 = vmatpush1.bf16.msra.mxu0 0
        %1154 = vmatprep.subr.bf16.mxu0 0
        %1155 = vmatpush1.bf16.msra.mxu0 0
        %1156 = vmatprep.subr.bf16.mxu0 0
        %1157 = vmatpush1.bf16.msra.mxu0 0
        %1158 = vmatprep.subr.bf16.mxu0 0
        %1159 = vmatpush1.bf16.msra.mxu0 0
        %1160 = vmatprep.subr.bf16.mxu0 0
        %1161 = vmatpush1.bf16.msra.mxu0 0
        %1162 = vmatprep.subr.bf16.mxu0 0
        %1163 = vmatpush1.bf16.msra.mxu0 0
        %1164 = vmatprep.subr.bf16.mxu0 0
        %1165 = vmatpush1.bf16.msra.mxu0 0
        %1166 = vmatprep.subr.bf16.mxu0 0
        %1167 = vmatpush1.bf16.msra.mxu0 0
        %1168 = vmatprep.mubr.bf16.mxu0 0
        %1169 = vmatmul.mubr.bf16.gmra.mrb[0].mxu0 %v735
        %v1170 = vpop.f32.mrb[0].mxu0
        %v1171 = vadd.f32 0.0, %v1170
        %v1172 = vpop.f32.mrb[0].mxu0
        %v1173 = vadd.f32 0.0, %v1172
        %v1174 = vpop.f32.mrb[0].mxu0
        %v1175 = vadd.f32 0.0, %v1174
        %v1176 = vpop.f32.mrb[0].mxu0
        %v1177 = vadd.f32 0.0, %v1176
        %1178 = vmatprep.mubr.bf16.mxu0 0
        %1179 = vmatmul.mubr.bf16.gmra.mrb[0].mxu0 %v736
        %v1180 = vpop.f32.mrb[0].mxu0
        %v1181 = vadd.f32 0.0, %v1180
        %v1182 = vpop.f32.mrb[0].mxu0
        %v1183 = vadd.f32 0.0, %v1182
        %v1184 = vpop.f32.mrb[0].mxu0
        %v1185 = vadd.f32 0.0, %v1184
        %v1186 = vpop.f32.mrb[0].mxu0
        %v1187 = vadd.f32 0.0, %v1186
        %1188 = vmatprep.mubr.bf16.mxu0 0
        %1189 = vmatmul.mubr.bf16.gmra.mrb[0].mxu0 %v737
        %v1190 = vpop.f32.mrb[0].mxu0
        %v1191 = vadd.f32 0.0, %v1190
        %v1192 = vpop.f32.mrb[0].mxu0
        %v1193 = vadd.f32 0.0, %v1192
        %v1194 = vpop.f32.mrb[0].mxu0
        %v1195 = vadd.f32 0.0, %v1194
        %v1196 = vpop.f32.mrb[0].mxu0
        %v1197 = vadd.f32 0.0, %v1196
        %1198 = vmatprep.mubr.bf16.mxu0 0
        %1199 = vmatmul.mubr.bf16.gmra.mrb[0].mxu0 %v738
        %v1200 = vpop.f32.mrb[0].mxu0
        %v1201 = vadd.f32 0.0, %v1200
        %v1202 = vpop.f32.mrb[0].mxu0
        %v1203 = vadd.f32 0.0, %v1202
        %v1204 = vpop.f32.mrb[0].mxu0
        %v1205 = vadd.f32 0.0, %v1204
        %v1206 = vpop.f32.mrb[0].mxu0
        %v1207 = vadd.f32 0.0, %v1206
        %1208 = vmatprep.mubr.bf16.mxu0 0
        %1209 = vmatmul.mubr.bf16.gmra.mrb[0].mxu0 %v739
        %v1210 = vpop.f32.mrb[0].mxu0
        %v1211 = vadd.f32 0.0, %v1210
        %v1212 = vpop.f32.mrb[0].mxu0
        %v1213 = vadd.f32 0.0, %v1212
        %v1214 = vpop.f32.mrb[0].mxu0
        %v1215 = vadd.f32 0.0, %v1214
        %v1216 = vpop.f32.mrb[0].mxu0
        %v1217 = vadd.f32 0.0, %v1216
        %1218 = vmatprep.mubr.bf16.mxu0 0
        %1219 = vmatmul.mubr.bf16.gmra.mrb[0].mxu0 %v740
        %v1220 = vpop.f32.mrb[0].mxu0
        %v1221 = vadd.f32 0.0, %v1220
        %v1222 = vpop.f32.mrb[0].mxu0
        %v1223 = vadd.f32 0.0, %v1222
        %v1224 = vpop.f32.mrb[0].mxu0
        %v1225 = vadd.f32 0.0, %v1224
        %v1226 = vpop.f32.mrb[0].mxu0
        %v1227 = vadd.f32 0.0, %v1226
        %1228 = vmatprep.mubr.bf16.mxu0 0
        %1229 = vmatmul.mubr.bf16.gmra.mrb[0].mxu0 %v741
        %v1230 = vpop.f32.mrb[0].mxu0
        %v1231 = vadd.f32 0.0, %v1230
        %v1232 = vpop.f32.mrb[0].mxu0
        %v1233 = vadd.f32 0.0, %v1232
        %v1234 = vpop.f32.mrb[0].mxu0
        %v1235 = vadd.f32 0.0, %v1234
        %v1236 = vpop.f32.mrb[0].mxu0
        %v1237 = vadd.f32 0.0, %v1236
        %1238 = vmatprep.mubr.bf16.mxu0 0
        %1239 = vmatmul.mubr.bf16.gmra.mrb[0].mxu0 %v742
        %v1240 = vpop.f32.mrb[0].mxu0
        %v1241 = vadd.f32 0.0, %v1240
        %v1242 = vpop.f32.mrb[0].mxu0
        %v1243 = vadd.f32 0.0, %v1242
        %v1244 = vpop.f32.mrb[0].mxu0
        %v1245 = vadd.f32 0.0, %v1244
        %v1246 = vpop.f32.mrb[0].mxu0
        %v1247 = vadd.f32 0.0, %v1246
        %1248 = vmatprep.mubr.bf16.mxu0 0
        %1249 = vmatmul.mubr.bf16.gmra.mrb[0].mxu0 %v743
        %v1250 = vpop.f32.mrb[0].mxu0
        %v1251 = vadd.f32 0.0, %v1250
        %v1252 = vpop.f32.mrb[0].mxu0
        %v1253 = vadd.f32 0.0, %v1252
        %v1254 = vpop.f32.mrb[0].mxu0
        %v1255 = vadd.f32 0.0, %v1254
        %v1256 = vpop.f32.mrb[0].mxu0
        %v1257 = vadd.f32 0.0, %v1256
        %1258 = vmatprep.mubr.bf16.mxu0 0
        %1259 = vmatmul.mubr.bf16.gmra.mrb[0].mxu0 %v744
        %v1260 = vpop.f32.mrb[0].mxu0
        %v1261 = vadd.f32 0.0, %v1260
        %v1262 = vpop.f32.mrb[0].mxu0
        %v1263 = vadd.f32 0.0, %v1262
        %v1264 = vpop.f32.mrb[0].mxu0
        %v1265 = vadd.f32 0.0, %v1264
        %v1266 = vpop.f32.mrb[0].mxu0
        %v1267 = vadd.f32 0.0, %v1266
        %1268 = vmatprep.mubr.bf16.mxu0 0
        %1269 = vmatmul.mubr.bf16.gmra.mrb[0].mxu0 %v745
        %v1270 = vpop.f32.mrb[0].mxu0
        %v1271 = vadd.f32 0.0, %v1270
        %v1272 = vpop.f32.mrb[0].mxu0
        %v1273 = vadd.f32 0.0, %v1272
        %v1274 = vpop.f32.mrb[0].mxu0
        %v1275 = vadd.f32 0.0, %v1274
        %v1276 = vpop.f32.mrb[0].mxu0
        %v1277 = vadd.f32 0.0, %v1276
        %1278 = vmatprep.mubr.bf16.mxu0 0
        %1279 = vmatmul.mubr.bf16.gmra.mrb[0].mxu0 %v746
        %v1280 = vpop.f32.mrb[0].mxu0
        %v1281 = vadd.f32 0.0, %v1280
        %v1282 = vpop.f32.mrb[0].mxu0
        %v1283 = vadd.f32 0.0, %v1282
        %v1284 = vpop.f32.mrb[0].mxu0
        %v1285 = vadd.f32 0.0, %v1284
        %v1286 = vpop.f32.mrb[0].mxu0
        %v1287 = vadd.f32 0.0, %v1286
        %1288 = vmatprep.mubr.bf16.mxu0 0
        %1289 = vmatmul.mubr.bf16.gmra.mrb[0].mxu0 %v747
        %v1290 = vpop.f32.mrb[0].mxu0
        %v1291 = vadd.f32 0.0, %v1290
        %v1292 = vpop.f32.mrb[0].mxu0
        %v1293 = vadd.f32 0.0, %v1292
        %v1294 = vpop.f32.mrb[0].mxu0
        %v1295 = vadd.f32 0.0, %v1294
        %v1296 = vpop.f32.mrb[0].mxu0
        %v1297 = vadd.f32 0.0, %v1296
        %1298 = vmatprep.mubr.bf16.mxu0 0
        %1299 = vmatmul.mubr.bf16.gmra.mrb[0].mxu0 %v748
        %v1300 = vpop.f32.mrb[0].mxu0
        %v1301 = vadd.f32 0.0, %v1300
        %v1302 = vpop.f32.mrb[0].mxu0
        %v1303 = vadd.f32 0.0, %v1302
        %v1304 = vpop.f32.mrb[0].mxu0
        %v1305 = vadd.f32 0.0, %v1304
        %v1306 = vpop.f32.mrb[0].mxu0
        %v1307 = vadd.f32 0.0, %v1306
        %1308 = vmatprep.mubr.bf16.mxu0 0
        %1309 = vmatmul.mubr.bf16.gmra.mrb[0].mxu0 %v749
        %v1310 = vpop.f32.mrb[0].mxu0
        %v1311 = vadd.f32 0.0, %v1310
        %v1312 = vpop.f32.mrb[0].mxu0
        %v1313 = vadd.f32 0.0, %v1312
        %v1314 = vpop.f32.mrb[0].mxu0
        %v1315 = vadd.f32 0.0, %v1314
        %v1316 = vpop.f32.mrb[0].mxu0
        %v1317 = vadd.f32 0.0, %v1316
        %1318 = vmatprep.mubr.bf16.mxu0 0
        %1319 = vmatmul.mubr.bf16.gmra.mrb[0].mxu0 %v750
        %v1320 = vpop.f32.mrb[0].mxu0
        %v1321 = vadd.f32 0.0, %v1320
        %v1322 = vpop.f32.mrb[0].mxu0
        %v1323 = vadd.f32 0.0, %v1322
        %v1324 = vpop.f32.mrb[0].mxu0
        %v1325 = vadd.f32 0.0, %v1324
        %v1326 = vpop.f32.mrb[0].mxu0
        %v1327 = vadd.f32 0.0, %v1326
        %1328 = vdwg.mxu0
        %1329 = vst [vmem:[%s218] sm:$0xff] %v978
        %1330 = vst [vmem:[%s218 + $0x8] sm:$0xff] %v980
        %1331 = vst [vmem:[%s218 + $0x10] sm:$0xff] %v1171
        %1332 = vst [vmem:[%s218 + $0x18] sm:$0xff] %v1173
        %1333 = vst [vmem:[%s218 + $0x20] sm:$0xff] %v982
        %1334 = vst [vmem:[%s218 + $0x28] sm:$0xff] %v984
        %1335 = vst [vmem:[%s218 + $0x30] sm:$0xff] %v1175
        %1336 = vst [vmem:[%s218 + $0x38] sm:$0xff] %v1177
        %1337 = vst [vmem:[%s218 + $0x40] sm:$0xff] %v988
        %1338 = vst [vmem:[%s218 + $0x48] sm:$0xff] %v990
        %1339 = vst [vmem:[%s218 + $0x50] sm:$0xff] %v1181
        %1340 = vst [vmem:[%s218 + $0x58] sm:$0xff] %v1183
        %1341 = vst [vmem:[%s218 + $0x60] sm:$0xff] %v992
        %1342 = vst [vmem:[%s218 + $0x68] sm:$0xff] %v994
        %1343 = vst [vmem:[%s218 + $0x70] sm:$0xff] %v1185
        %1344 = vst [vmem:[%s218 + $0x78] sm:$0xff] %v1187
        %1345 = vst [vmem:[%s218 + $0x80] sm:$0xff] %v998
        %1346 = vst [vmem:[%s218 + $0x88] sm:$0xff] %v1000
        %1347 = vst [vmem:[%s218 + $0x90] sm:$0xff] %v1191
        %1348 = vst [vmem:[%s218 + $0x98] sm:$0xff] %v1193
        %1349 = vst [vmem:[%s218 + $0xa0] sm:$0xff] %v1002
        %1350 = vst [vmem:[%s218 + $0xa8] sm:$0xff] %v1004
        %1351 = vst [vmem:[%s218 + $0xb0] sm:$0xff] %v1195
        %1352 = vst [vmem:[%s218 + $0xb8] sm:$0xff] %v1197
        %1353 = vst [vmem:[%s218 + $0xc0] sm:$0xff] %v1008
        %1354 = vst [vmem:[%s218 + $0xc8] sm:$0xff] %v1010
        %1355 = vst [vmem:[%s218 + $0xd0] sm:$0xff] %v1201
        %1356 = vst [vmem:[%s218 + $0xd8] sm:$0xff] %v1203
        %1357 = vst [vmem:[%s218 + $0xe0] sm:$0xff] %v1012
        %1358 = vst [vmem:[%s218 + $0xe8] sm:$0xff] %v1014
        %1359 = vst [vmem:[%s218 + $0xf0] sm:$0xff] %v1205
        %1360 = vst [vmem:[%s218 + $0xf8] sm:$0xff] %v1207
        %1361 = vst [vmem:[%s218 + $0x100] sm:$0xff] %v1018
        %1362 = vst [vmem:[%s218 + $0x108] sm:$0xff] %v1020
        %1363 = vst [vmem:[%s218 + $0x110] sm:$0xff] %v1211
        %1364 = vst [vmem:[%s218 + $0x118] sm:$0xff] %v1213
        %1365 = vst [vmem:[%s218 + $0x120] sm:$0xff] %v1022
        %1366 = vst [vmem:[%s218 + $0x128] sm:$0xff] %v1024
        %1367 = vst [vmem:[%s218 + $0x130] sm:$0xff] %v1215
        %1368 = vst [vmem:[%s218 + $0x138] sm:$0xff] %v1217
        %1369 = vst [vmem:[%s218 + $0x140] sm:$0xff] %v1028
        %1370 = vst [vmem:[%s218 + $0x148] sm:$0xff] %v1030
        %1371 = vst [vmem:[%s218 + $0x150] sm:$0xff] %v1221
        %1372 = vst [vmem:[%s218 + $0x158] sm:$0xff] %v1223
        %1373 = vst [vmem:[%s218 + $0x160] sm:$0xff] %v1032
        %1374 = vst [vmem:[%s218 + $0x168] sm:$0xff] %v1034
        %1375 = vst [vmem:[%s218 + $0x170] sm:$0xff] %v1225
        %1376 = vst [vmem:[%s218 + $0x178] sm:$0xff] %v1227
        %1377 = vst [vmem:[%s218 + $0x180] sm:$0xff] %v1038
        %1378 = vst [vmem:[%s218 + $0x188] sm:$0xff] %v1040
        %1379 = vst [vmem:[%s218 + $0x190] sm:$0xff] %v1231
        %1380 = vst [vmem:[%s218 + $0x198] sm:$0xff] %v1233
        %1381 = vst [vmem:[%s218 + $0x1a0] sm:$0xff] %v1042
        %1382 = vst [vmem:[%s218 + $0x1a8] sm:$0xff] %v1044
        %1383 = vst [vmem:[%s218 + $0x1b0] sm:$0xff] %v1235
        %1384 = vst [vmem:[%s218 + $0x1b8] sm:$0xff] %v1237
        %1385 = vst [vmem:[%s218 + $0x1c0] sm:$0xff] %v1048
        %1386 = vst [vmem:[%s218 + $0x1c8] sm:$0xff] %v1050
        %1387 = vst [vmem:[%s218 + $0x1d0] sm:$0xff] %v1241
        %1388 = vst [vmem:[%s218 + $0x1d8] sm:$0xff] %v1243
        %1389 = vst [vmem:[%s218 + $0x1e0] sm:$0xff] %v1052
        %1390 = vst [vmem:[%s218 + $0x1e8] sm:$0xff] %v1054
        %1391 = vst [vmem:[%s218 + $0x1f0] sm:$0xff] %v1245
        %1392 = vst [vmem:[%s218 + $0x1f8] sm:$0xff] %v1247
        %1393 = vst [vmem:[%s218 + $0x200] sm:$0xff] %v1058
        %1394 = vst [vmem:[%s218 + $0x208] sm:$0xff] %v1060
        %1395 = vst [vmem:[%s218 + $0x210] sm:$0xff] %v1251
        %1396 = vst [vmem:[%s218 + $0x218] sm:$0xff] %v1253
        %1397 = vst [vmem:[%s218 + $0x220] sm:$0xff] %v1062
        %1398 = vst [vmem:[%s218 + $0x228] sm:$0xff] %v1064
        %1399 = vst [vmem:[%s218 + $0x230] sm:$0xff] %v1255
        %1400 = vst [vmem:[%s218 + $0x238] sm:$0xff] %v1257
        %1401 = vst [vmem:[%s218 + $0x240] sm:$0xff] %v1068
        %1402 = vst [vmem:[%s218 + $0x248] sm:$0xff] %v1070
        %1403 = vst [vmem:[%s218 + $0x250] sm:$0xff] %v1261
        %1404 = vst [vmem:[%s218 + $0x258] sm:$0xff] %v1263
        %1405 = vst [vmem:[%s218 + $0x260] sm:$0xff] %v1072
        %1406 = vst [vmem:[%s218 + $0x268] sm:$0xff] %v1074
        %1407 = vst [vmem:[%s218 + $0x270] sm:$0xff] %v1265
        %1408 = vst [vmem:[%s218 + $0x278] sm:$0xff] %v1267
        %1409 = vst [vmem:[%s218 + $0x280] sm:$0xff] %v1078
        %1410 = vst [vmem:[%s218 + $0x288] sm:$0xff] %v1080
        %1411 = vst [vmem:[%s218 + $0x290] sm:$0xff] %v1271
        %1412 = vst [vmem:[%s218 + $0x298] sm:$0xff] %v1273
        %1413 = vst [vmem:[%s218 + $0x2a0] sm:$0xff] %v1082
        %1414 = vst [vmem:[%s218 + $0x2a8] sm:$0xff] %v1084
        %1415 = vst [vmem:[%s218 + $0x2b0] sm:$0xff] %v1275
        %1416 = vst [vmem:[%s218 + $0x2b8] sm:$0xff] %v1277
        %1417 = vst [vmem:[%s218 + $0x2c0] sm:$0xff] %v1088
        %1418 = vst [vmem:[%s218 + $0x2c8] sm:$0xff] %v1090
        %1419 = vst [vmem:[%s218 + $0x2d0] sm:$0xff] %v1281
        %1420 = vst [vmem:[%s218 + $0x2d8] sm:$0xff] %v1283
        %1421 = vst [vmem:[%s218 + $0x2e0] sm:$0xff] %v1092
        %1422 = vst [vmem:[%s218 + $0x2e8] sm:$0xff] %v1094
        %1423 = vst [vmem:[%s218 + $0x2f0] sm:$0xff] %v1285
        %1424 = vst [vmem:[%s218 + $0x2f8] sm:$0xff] %v1287
        %1425 = vst [vmem:[%s218 + $0x300] sm:$0xff] %v1098
        %1426 = vst [vmem:[%s218 + $0x308] sm:$0xff] %v1100
        %1427 = vst [vmem:[%s218 + $0x310] sm:$0xff] %v1291
        %1428 = vst [vmem:[%s218 + $0x318] sm:$0xff] %v1293
        %1429 = vst [vmem:[%s218 + $0x320] sm:$0xff] %v1102
        %1430 = vst [vmem:[%s218 + $0x328] sm:$0xff] %v1104
        %1431 = vst [vmem:[%s218 + $0x330] sm:$0xff] %v1295
        %1432 = vst [vmem:[%s218 + $0x338] sm:$0xff] %v1297
        %1433 = vst [vmem:[%s218 + $0x340] sm:$0xff] %v1108
        %1434 = vst [vmem:[%s218 + $0x348] sm:$0xff] %v1110
        %1435 = vst [vmem:[%s218 + $0x350] sm:$0xff] %v1301
        %1436 = vst [vmem:[%s218 + $0x358] sm:$0xff] %v1303
        %1437 = vst [vmem:[%s218 + $0x360] sm:$0xff] %v1112
        %1438 = vst [vmem:[%s218 + $0x368] sm:$0xff] %v1114
        %1439 = vst [vmem:[%s218 + $0x370] sm:$0xff] %v1305
        %1440 = vst [vmem:[%s218 + $0x378] sm:$0xff] %v1307
        %1441 = vst [vmem:[%s218 + $0x380] sm:$0xff] %v1118
        %1442 = vst [vmem:[%s218 + $0x388] sm:$0xff] %v1120
        %1443 = vst [vmem:[%s218 + $0x390] sm:$0xff] %v1311
        %1444 = vst [vmem:[%s218 + $0x398] sm:$0xff] %v1313
        %1445 = vst [vmem:[%s218 + $0x3a0] sm:$0xff] %v1122
        %1446 = vst [vmem:[%s218 + $0x3a8] sm:$0xff] %v1124
        %1447 = vst [vmem:[%s218 + $0x3b0] sm:$0xff] %v1315
        %1448 = vst [vmem:[%s218 + $0x3b8] sm:$0xff] %v1317
        %1449 = vst [vmem:[%s218 + $0x3c0] sm:$0xff] %v1128
        %1450 = vst [vmem:[%s218 + $0x3c8] sm:$0xff] %v1130
        %1451 = vst [vmem:[%s218 + $0x3d0] sm:$0xff] %v1321
        %1452 = vst [vmem:[%s218 + $0x3d8] sm:$0xff] %v1323
        %1453 = vst [vmem:[%s218 + $0x3e0] sm:$0xff] %v1132
        %1454 = vst [vmem:[%s218 + $0x3e8] sm:$0xff] %v1134
        %1455 = vst [vmem:[%s218 + $0x3f0] sm:$0xff] %v1325
        %1456 = vst [vmem:[%s218 + $0x3f8] sm:$0xff] %v1327
        %s1457 = sand.u32 %s97, 1
        %s1458 = scalar_lea.sflag [#allocation4], %s1457
        %s1459 = sand.u32 %s97, 1
        %s1460 = smul.addr %s1459, 1024
        %s1461 = scalar_lea.vmem [#allocation8], %s1460
        // Predicated region
        $region45: #{tpu_custom_call.1} parent=31 // pred_check
          %p1462 = pneg %p107
        $region46: #{tpu_custom_call.1} parent=31 // pred_check_branch
          %1464 = sbr.rel (%p1462) target = $region48
        $region47: #{tpu_custom_call.1} parent=31 // pred_region
          %s1465 = smul.u32 32, %s21
          %s1467 = ssub.s32 16384, 16384
          %1468 = vsyncadd %s1458, %s1467
          %s1469 = smul.addr %s1465, 4
          %s1470 = smul.addr %s1469, 128
          %s1471 = scalar_lea.hbm %s3, %s1470
          %s1472 = sshll.u32 %s1461, 4
          %s1473 = int_to_ptr.vmem [resolvable:$true] %s1472
          %1478 = dma.vmem_to_hbm [thread:$0]  %s1473, 16384, %s1471, %s1458, 512, 512, 32
        $region48: #{tpu_custom_call.1} parent=31 // pred_fallthru
          _
      $region32: #{tpu_custom_call.1} parent=5 // pred_fallthru
        _
      %p1479 = scmp.le.s32.totalorder 2, %s16
      // Predicated region
      $region49: #{tpu_custom_call.1} parent=5 // pred_check
        %p1480 = pneg %p1479
      $region50: #{tpu_custom_call.1} parent=5 // pred_check_branch
        %1482 = sbr.rel (%p1480) target = $region52
      $region51: #{tpu_custom_call.1} parent=5 // pred_region
        %s1483 = ssub.s32 %s16, 2
        // Predicated region
        $region53: #{tpu_custom_call.1} parent=51 // pred_check
          %p1484 = pneg %p113
        $region54: #{tpu_custom_call.1} parent=51 // pred_check_branch
          %1486 = sbr.rel (%p1484) target = $region56
        $region55: #{tpu_custom_call.1} parent=51 // pred_region
          %s1487 = sand.u32 %s98, 1
          %s1488 = scalar_lea.sflag [#allocation4], %s1487
          %s1489 = sand.u32 %s98, 1
          %s1490 = smul.addr %s1489, 1024
          %s1491 = scalar_lea.vmem [#allocation8], %s1490
          %1492 = dma.done %s1488, 16384
        $region56: #{tpu_custom_call.1} parent=51 // pred_fallthru
          _
      $region52: #{tpu_custom_call.1} parent=5 // pred_fallthru
        _
    $region6: #{tpu_custom_call.1} parent=1 // loop_footer
      %s20 = sadd.s32 1, %s16
    $region7: #{tpu_custom_call.1} parent=1 // loop_footer_branch
      %15 = sbr.rel target = $region3
    $region8: #{tpu_custom_call.1} parent=1 // loop_exit
      _
    %1493 = vsyncpa [#allocation3], 1
    %s1494 = scalar_lea.sflag [#allocation3], 1
    %1495 = vsyncpa %s1494, 1
    %1496 = vsyncpa [#allocation6], 1
    %1497 = vsyncpa [#allocation4], 1
    %s1498 = scalar_lea.sflag [#allocation4], 1
    %1499 = vsyncpa %s1498, 1

</llo_original>
